<compile_context>
chip_gen: v6e
topology: v6e:2x2x1
jax: 0.10.0
libtpu: 0.0.40
codegen_flags: <defaults>
</compile_context>

<pallas_src>
import functools

import jax
import jax.numpy as jnp
from jax.experimental import pallas as pl
from jax.experimental.pallas import tpu as pltpu

LANE = 128


def _round_up(v, m):
    return ((v + m - 1) // m) * m


def _pad2d(x, rows, cols):
    r, c = x.shape
    if r == rows and c == cols:
        return x
    return jnp.pad(x, ((0, rows - r), (0, cols - c)))


def _pick_tile(padded_dim, desired, *, min_blocks=1):
    """Largest multiple of 128 that divides `padded_dim`, <= desired, and (if
    possible) leaves at least `min_blocks` blocks (megacore split on v7x)."""
    assert padded_dim % LANE == 0
    cap = padded_dim // min_blocks
    if cap < LANE:
        cap = padded_dim                      # can't split further
    cap = min(cap, desired)
    cap = max(LANE, (cap // LANE) * LANE)
    t = cap
    while padded_dim % t:
        t -= LANE
    return t


# ---------------------------------------------------------------------------
# Pallas kernel:  O = act( X @ Y [+ bias] )
#   X streamed in (tm, tk) tiles (bandwidth-critical operand).
#   Y fully VMEM-resident (constant block index -> fetched once per core),
#     sliced along K inside the kernel.
#   grid = (M//tm, K//tk); reduction axis last; f32 accumulator scratch.
# ---------------------------------------------------------------------------
def _mm_resident_rhs_kernel(*refs, tk, apply_relu, has_bias):
    if has_bias:
        x_ref, y_ref, b_ref, o_ref, acc_ref = refs
    else:
        x_ref, y_ref, o_ref, acc_ref = refs
        b_ref = None

    k = pl.program_id(1)

    @pl.when(k == 0)
    def _init():
        acc_ref[...] = jnp.zeros_like(acc_ref)

    kk = pl.multiple_of(k * tk, tk)           # aligned dynamic slice into resident Y
    acc_ref[...] += jnp.dot(
        x_ref[...], y_ref[pl.ds(kk, tk), :], preferred_element_type=jnp.float32
    )

    @pl.when(k == pl.num_programs(1) - 1)
    def _finalize():
        out = acc_ref[...]
        if has_bias:
            out = out + b_ref[...]            # (1, n) broadcast over sublanes
        if apply_relu:
            out = jnp.maximum(out, 0.0)
        o_ref[...] = out.astype(o_ref.dtype)


def matmul_resident_rhs(x, y, bias=None, *, apply_relu=False,
                        out_dtype=jnp.bfloat16, tm_des=512, tk_des=2048):
    """O = act(X @ Y [+ bias]).  All dims must already be multiples of 128.

    x: [M, K] bf16 (streamed), y: [K, N] bf16 (VMEM-resident), bias: [1, N] f32.
    """
    m, kdim = x.shape
    k2, n = y.shape
    assert kdim == k2
    assert m % LANE == 0 and kdim % LANE == 0 and n % LANE == 0

    tm = _pick_tile(m, tm_des, min_blocks=2)   # >=2 row blocks -> v7x megacore
    tk = _pick_tile(kdim, tk_des)
    grid = (m // tm, kdim // tk)

    has_bias = bias is not None
    in_specs = [
        pl.BlockSpec((tm, tk), lambda i, k: (i, k)),       # streamed X tiles
        pl.BlockSpec((kdim, n), lambda i, k: (0, 0)),      # resident Y (DMA'd once)
    ]
    inputs = [x, y]
    if has_bias:
        in_specs.append(pl.BlockSpec((1, n), lambda i, k: (0, 0)))
        inputs.append(bias)

    kernel = functools.partial(
        _mm_resident_rhs_kernel, tk=tk, apply_relu=apply_relu, has_bias=has_bias
    )

    out_itemsize = jnp.dtype(out_dtype).itemsize
    flops = 2 * m * kdim * n
    bytes_accessed = (x.size * x.dtype.itemsize + y.size * y.dtype.itemsize
                      + (bias.size * 4 if has_bias else 0) + m * n * out_itemsize)

    return pl.pallas_call(
        kernel,
        out_shape=jax.ShapeDtypeStruct((m, n), out_dtype),
        grid_spec=pltpu.PrefetchScalarGridSpec(
            num_scalar_prefetch=0,
            grid=grid,
            in_specs=in_specs,
            out_specs=pl.BlockSpec((tm, n), lambda i, k: (i, 0)),
            scratch_shapes=[pltpu.VMEM((tm, n), jnp.float32)],
        ),
        compiler_params=pltpu.CompilerParams(
            dimension_semantics=("parallel", "arbitrary"),
            vmem_limit_bytes=48 * 1024 * 1024,   # headroom on v7x 64 MiB VMEM
        ),
        cost_estimate=pl.CostEstimate(
            flops=flops, transcendentals=0, bytes_accessed=bytes_accessed
        ),
    )(*inputs)


# ---------------------------------------------------------------------------
# Glue: dense gcn_norm, parameter init, GRACE forward
# ---------------------------------------------------------------------------
def gcn_norm_dense(edge_index, num_nodes):
    """Dense equivalent of PyG gcn_norm with self loops (symmetric norm).
    Assumes edge_index has no pre-existing self loops / duplicate edges."""
    a = jnp.zeros((num_nodes, num_nodes), jnp.float32)
    a = a.at[edge_index[0], edge_index[1]].set(1.0)
    a = a + jnp.eye(num_nodes, dtype=jnp.float32)          # add self loops
    deg = jnp.sum(a, axis=1)
    d_inv_sqrt = jnp.where(deg > 0, 1.0 / jnp.sqrt(deg), 0.0)
    return d_inv_sqrt[:, None] * a * d_inv_sqrt[None, :]


def init_grace_params(key, in_channels, num_hidden, k=2):
    """Encoder (skip=False): conv0: in -> 2*hidden, ..., conv[k-1]: 2*hidden -> hidden."""
    dims = [in_channels] + [2 * num_hidden] * (k - 1) + [num_hidden]
    params = []
    for i in range(k):
        key, wk = jax.random.split(key)
        fan_in, fan_out = dims[i], dims[i + 1]
        scale = jnp.sqrt(6.0 / (fan_in + fan_out))          # glorot
        w = jax.random.uniform(wk, (fan_in, fan_out), jnp.float32, -scale, scale)
        b = jnp.zeros((fan_out,), jnp.float32)
        params.append((w, b))
    return params


def grace_forward(x, edge_index, params):
    """GRACE.forward(x, edge_index) == Encoder.forward with k GCN layers + ReLU."""
    n, f_in = x.shape
    np_nodes = _round_up(n, LANE)

    # A_norm built, padded to 128-multiples and cast to bf16 ONCE (outside loop).
    a_pad = _pad2d(gcn_norm_dense(edge_index, n), np_nodes, np_nodes)
    a_pad = a_pad.astype(jnp.bfloat16)

    h = _pad2d(x, np_nodes, _round_up(f_in, LANE)).astype(jnp.bfloat16)

    num_layers = len(params)
    for li, (w, b) in enumerate(params):
        f_in_l, f_out_l = w.shape
        kp = _round_up(f_in_l, LANE)
        fp = _round_up(f_out_l, LANE)
        w_pad = _pad2d(w, kp, fp).astype(jnp.bfloat16)
        b_pad = _pad2d(b.astype(jnp.float32).reshape(1, -1), 1, fp)

        # Feature transform XW (hoisted out of the A aggregation; no dummy bias).
        xw = matmul_resident_rhs(h, w_pad, None, apply_relu=False,
                                 out_dtype=jnp.bfloat16, tm_des=512, tk_des=512)

        # Aggregation + bias + ReLU fused:  relu(A_norm @ XW + b).
        # XW is held VMEM-resident, A streamed in large tiles.
        last = li == num_layers - 1
        h = matmul_resident_rhs(
            a_pad, xw, b_pad, apply_relu=True,
            out_dtype=jnp.float32 if last else jnp.bfloat16,
            tm_des=512, tk_des=2048,
        )
    return h[:n, :params[-1][0].shape[1]]


def reference_forward(x, edge_index, params):
    """Pure-JAX reference mimicking the kernel's bf16-in / f32-accumulate math."""
    n = x.shape[0]
    a = gcn_norm_dense(edge_index, n).astype(jnp.bfloat16)
    h = x
    num_layers = len(params)
    for li, (w, b) in enumerate(params):
        xw = jnp.dot(h.astype(jnp.bfloat16), w.astype(jnp.bfloat16),
                     preferred_element_type=jnp.float32).astype(jnp.bfloat16)
        out = jnp.maximum(
            jnp.dot(a, xw, preferred_element_type=jnp.float32) + b[None, :], 0.0
        )
        h = out if li == num_layers - 1 else out.astype(jnp.bfloat16)
    return h


# ---------------------------------------------------------------------------
if __name__ == "__main__":
    key = jax.random.PRNGKey(0)

    # Small synthetic graph: N nodes, in_channels features, num_hidden output dim.
    N = 256
    in_channels = 64
    num_hidden = 32
    k = 2

    key, xk = jax.random.split(key)
    x = jax.random.normal(xk, (N, in_channels), jnp.float32)

    # Deterministic undirected edge set: ring + a few chords (both directions).
    src = jnp.arange(N, dtype=jnp.int32)
    ring_dst = (src + 1) % N
    chord_dst = (src + 5) % N
    rows = jnp.concatenate([src, ring_dst, src, chord_dst])
    cols = jnp.concatenate([ring_dst, src, chord_dst, src])
    edge_index = jnp.stack([rows, cols], axis=0)            # [2, E]

    params = init_grace_params(key, in_channels, num_hidden, k=k)

    fwd = jax.jit(lambda xx: grace_forward(xx, edge_index, params))
    out = jax.block_until_ready(fwd(x))

    ref = reference_forward(x, edge_index, params)
    assert out.shape == (N, num_hidden), out.shape
    assert jnp.allclose(out, ref, atol=2e-2, rtol=2e-2), float(
        jnp.max(jnp.abs(out - ref))
    )

    print("KERNEL_OK")
</pallas_src>

<mosaic_0001>
module attributes {stable_mosaic.version = 11 : i64} {
  func.func @_mm_resident_rhs_kernel(%arg0: i32, %arg1: i32, %arg2: memref<128x128xbf16, #tpu.memory_space<vmem>>, %arg3: memref<128x128xbf16, #tpu.memory_space<vmem>>, %arg4: memref<128x128xbf16, #tpu.memory_space<vmem>>, %arg5: memref<128x128xf32, #tpu.memory_space<vmem>>) attributes {dimension_semantics = [#tpu.dimension_semantics<parallel>, #tpu.dimension_semantics<arbitrary>], iteration_bounds = array<i64: 2, 1>, scalar_prefetch = 0 : i64, scratch_operands = 1 : i64, tpu.core_type = #tpu.core_type<tc>, window_params = [{transform_indices = @transform_0, window_bounds = array<i64: 128, 128>}, {pipeline_mode = #tpu.pipeline_mode<synchronous>, transform_indices = @transform_1, window_bounds = array<i64: 128, 128>}, {transform_indices = @transform_2, window_bounds = array<i64: 128, 128>}]} {
    %c0_i32 = arith.constant 0 : i32
    %0 = arith.cmpi eq, %arg1, %c0_i32 : i32
    %1 = arith.extui %0 : i1 to i32
    %c0_i32_0 = arith.constant 0 : i32
    %2 = arith.cmpi ne, %1, %c0_i32_0 : i32
    scf.if %2 {
      %cst_9 = arith.constant 0.000000e+00 : f32
      %15 = vector.broadcast %cst_9 : f32 to vector<128x128xf32>
      %c0_10 = arith.constant 0 : index
      %c0_11 = arith.constant 0 : index
      %16 = vector.load %arg5[%c0_10, %c0_11] : memref<128x128xf32, #tpu.memory_space<vmem>>, vector<128x128xf32>
      tpu.vector_store %arg5[%c0_10, %c0_11], %15 {strides = array<i32>} : memref<128x128xf32, #tpu.memory_space<vmem>>, vector<128x128xf32>,
    } else {
    }
    %c128_i32 = arith.constant 128 : i32
    %3 = arith.muli %arg1, %c128_i32 : i32
    %4 = tpu.assume_multiple %3, 128 : i32
    %c0 = arith.constant 0 : index
    %c0_1 = arith.constant 0 : index
    %5 = vector.load %arg5[%c0, %c0_1] : memref<128x128xf32, #tpu.memory_space<vmem>>, vector<128x128xf32>
    %c0_2 = arith.constant 0 : index
    %c0_3 = arith.constant 0 : index
    %6 = vector.load %arg2[%c0_2, %c0_3] : memref<128x128xbf16, #tpu.memory_space<vmem>>, vector<128x128xbf16>
    %7 = arith.index_cast %4 : i32 to index
    %c0_4 = arith.constant 0 : index
    %8 = vector.load %arg3[%7, %c0_4] : memref<128x128xbf16, #tpu.memory_space<vmem>>, vector<128x128xbf16>
    %cst = arith.constant dense<0.000000e+00> : vector<128x128xf32>
    %9 = tpu.matmul %6, %8, %cst {dimension_numbers = #tpu.dot_dimension_numbers<[1], [0], [0], [1], [0, 0, 1, 1], [], []>} : vector<128x128xbf16>, vector<128x128xbf16>, vector<128x128xf32> -> vector<128x128xf32>
    %10 = arith.addf %5, %9 : vector<128x128xf32>
    %c0_5 = arith.constant 0 : index
    %c0_6 = arith.constant 0 : index
    %11 = vector.load %arg5[%c0_5, %c0_6] : memref<128x128xf32, #tpu.memory_space<vmem>>, vector<128x128xf32>
    tpu.vector_store %arg5[%c0_5, %c0_6], %10 {strides = array<i32>} : memref<128x128xf32, #tpu.memory_space<vmem>>, vector<128x128xf32>,
    %c0_i32_7 = arith.constant 0 : i32
    %12 = arith.cmpi eq, %arg1, %c0_i32_7 : i32
    %13 = arith.extui %12 : i1 to i32
    %c0_i32_8 = arith.constant 0 : i32
    %14 = arith.cmpi ne, %13, %c0_i32_8 : i32
    scf.if %14 {
      %c0_9 = arith.constant 0 : index
      %c0_10 = arith.constant 0 : index
      %15 = vector.load %arg5[%c0_9, %c0_10] : memref<128x128xf32, #tpu.memory_space<vmem>>, vector<128x128xf32>
      %16 = arith.truncf %15 : vector<128x128xf32> to vector<128x128xbf16>
      %c0_11 = arith.constant 0 : index
      %c0_12 = arith.constant 0 : index
      %17 = vector.load %arg4[%c0_11, %c0_12] : memref<128x128xbf16, #tpu.memory_space<vmem>>, vector<128x128xbf16>
      tpu.vector_store %arg4[%c0_11, %c0_12], %16 {strides = array<i32>} : memref<128x128xbf16, #tpu.memory_space<vmem>>, vector<128x128xbf16>,
    } else {
    }
    return
  }
  func.func @transform_0(%arg0: i32, %arg1: i32) -> (i32, i32) {
    %c0_i32 = arith.constant 0 : i32
    return %arg0, %arg1 : i32, i32
  }
  func.func @transform_1(%arg0: i32, %arg1: i32) -> (i32, i32) {
    %c0_i32 = arith.constant 0 : i32
    %c0_i32_0 = arith.constant 0 : i32
    %c0_i32_1 = arith.constant 0 : i32
    return %c0_i32, %c0_i32_0 : i32, i32
  }
  func.func @transform_2(%arg0: i32, %arg1: i32) -> (i32, i32) {
    %c0_i32 = arith.constant 0 : i32
    %c0_i32_0 = arith.constant 0 : i32
    return %arg0, %c0_i32 : i32, i32
  }
}

module attributes {stable_mosaic.version = 11 : i64} {
  func.func @_mm_resident_rhs_kernel(%arg0: i32, %arg1: i32, %arg2: memref<128x256xbf16, #tpu.memory_space<vmem>>, %arg3: memref<256x128xbf16, #tpu.memory_space<vmem>>, %arg4: memref<1x128xf32, #tpu.memory_space<vmem>>, %arg5: memref<128x128xbf16, #tpu.memory_space<vmem>>, %arg6: memref<128x128xf32, #tpu.memory_space<vmem>>) attributes {dimension_semantics = [#tpu.dimension_semantics<parallel>, #tpu.dimension_semantics<arbitrary>], iteration_bounds = array<i64: 2, 1>, scalar_prefetch = 0 : i64, scratch_operands = 1 : i64, tpu.core_type = #tpu.core_type<tc>, window_params = [{transform_indices = @transform_0, window_bounds = array<i64: 128, 256>}, {pipeline_mode = #tpu.pipeline_mode<synchronous>, transform_indices = @transform_1, window_bounds = array<i64: 256, 128>}, {pipeline_mode = #tpu.pipeline_mode<synchronous>, transform_indices = @transform_2, window_bounds = array<i64: 1, 128>}, {transform_indices = @transform_3, window_bounds = array<i64: 128, 128>}]} {
    %c0_i32 = arith.constant 0 : i32
    %0 = arith.cmpi eq, %arg1, %c0_i32 : i32
    %1 = arith.extui %0 : i1 to i32
    %c0_i32_0 = arith.constant 0 : i32
    %2 = arith.cmpi ne, %1, %c0_i32_0 : i32
    scf.if %2 {
      %cst_9 = arith.constant 0.000000e+00 : f32
      %15 = vector.broadcast %cst_9 : f32 to vector<128x128xf32>
      %c0_10 = arith.constant 0 : index
      %c0_11 = arith.constant 0 : index
      %16 = vector.load %arg6[%c0_10, %c0_11] : memref<128x128xf32, #tpu.memory_space<vmem>>, vector<128x128xf32>
      tpu.vector_store %arg6[%c0_10, %c0_11], %15 {strides = array<i32>} : memref<128x128xf32, #tpu.memory_space<vmem>>, vector<128x128xf32>,
    } else {
    }
    %c256_i32 = arith.constant 256 : i32
    %3 = arith.muli %arg1, %c256_i32 : i32
    %4 = tpu.assume_multiple %3, 256 : i32
    %c0 = arith.constant 0 : index
    %c0_1 = arith.constant 0 : index
    %5 = vector.load %arg6[%c0, %c0_1] : memref<128x128xf32, #tpu.memory_space<vmem>>, vector<128x128xf32>
    %c0_2 = arith.constant 0 : index
    %c0_3 = arith.constant 0 : index
    %6 = vector.load %arg2[%c0_2, %c0_3] : memref<128x256xbf16, #tpu.memory_space<vmem>>, vector<128x256xbf16>
    %7 = arith.index_cast %4 : i32 to index
    %c0_4 = arith.constant 0 : index
    %8 = vector.load %arg3[%7, %c0_4] : memref<256x128xbf16, #tpu.memory_space<vmem>>, vector<256x128xbf16>
    %cst = arith.constant dense<0.000000e+00> : vector<128x128xf32>
    %9 = tpu.matmul %6, %8, %cst {dimension_numbers = #tpu.dot_dimension_numbers<[1], [0], [0], [1], [0, 0, 1, 1], [], []>} : vector<128x256xbf16>, vector<256x128xbf16>, vector<128x128xf32> -> vector<128x128xf32>
    %10 = arith.addf %5, %9 : vector<128x128xf32>
    %c0_5 = arith.constant 0 : index
    %c0_6 = arith.constant 0 : index
    %11 = vector.load %arg6[%c0_5, %c0_6] : memref<128x128xf32, #tpu.memory_space<vmem>>, vector<128x128xf32>
    tpu.vector_store %arg6[%c0_5, %c0_6], %10 {strides = array<i32>} : memref<128x128xf32, #tpu.memory_space<vmem>>, vector<128x128xf32>,
    %c0_i32_7 = arith.constant 0 : i32
    %12 = arith.cmpi eq, %arg1, %c0_i32_7 : i32
    %13 = arith.extui %12 : i1 to i32
    %c0_i32_8 = arith.constant 0 : i32
    %14 = arith.cmpi ne, %13, %c0_i32_8 : i32
    scf.if %14 {
      %c0_9 = arith.constant 0 : index
      %c0_10 = arith.constant 0 : index
      %15 = vector.load %arg6[%c0_9, %c0_10] : memref<128x128xf32, #tpu.memory_space<vmem>>, vector<128x128xf32>
      %c0_11 = arith.constant 0 : index
      %c0_12 = arith.constant 0 : index
      %16 = vector.load %arg4[%c0_11, %c0_12] : memref<1x128xf32, #tpu.memory_space<vmem>>, vector<1x128xf32>
      %17 = vector.broadcast %16 : vector<1x128xf32> to vector<128x128xf32>
      %18 = arith.addf %15, %17 : vector<128x128xf32>
      %cst_13 = arith.constant 0.000000e+00 : f32
      %19 = vector.broadcast %cst_13 : f32 to vector<128x128xf32>
      %20 = arith.maximumf %18, %19 : vector<128x128xf32>
      %21 = arith.truncf %20 : vector<128x128xf32> to vector<128x128xbf16>
      %c0_14 = arith.constant 0 : index
      %c0_15 = arith.constant 0 : index
      %22 = vector.load %arg5[%c0_14, %c0_15] : memref<128x128xbf16, #tpu.memory_space<vmem>>, vector<128x128xbf16>
      tpu.vector_store %arg5[%c0_14, %c0_15], %21 {strides = array<i32>} : memref<128x128xbf16, #tpu.memory_space<vmem>>, vector<128x128xbf16>,
    } else {
    }
    return
  }
  func.func @transform_0(%arg0: i32, %arg1: i32) -> (i32, i32) {
    %c0_i32 = arith.constant 0 : i32
    return %arg0, %arg1 : i32, i32
  }
  func.func @transform_1(%arg0: i32, %arg1: i32) -> (i32, i32) {
    %c0_i32 = arith.constant 0 : i32
    %c0_i32_0 = arith.constant 0 : i32
    %c0_i32_1 = arith.constant 0 : i32
    return %c0_i32, %c0_i32_0 : i32, i32
  }
  func.func @transform_2(%arg0: i32, %arg1: i32) -> (i32, i32) {
    %c0_i32 = arith.constant 0 : i32
    %c0_i32_0 = arith.constant 0 : i32
    %c0_i32_1 = arith.constant 0 : i32
    return %c0_i32, %c0_i32_0 : i32, i32
  }
  func.func @transform_3(%arg0: i32, %arg1: i32) -> (i32, i32) {
    %c0_i32 = arith.constant 0 : i32
    %c0_i32_0 = arith.constant 0 : i32
    return %arg0, %c0_i32 : i32, i32
  }
}

module attributes {stable_mosaic.version = 11 : i64} {
  func.func @_mm_resident_rhs_kernel(%arg0: i32, %arg1: i32, %arg2: memref<128x256xbf16, #tpu.memory_space<vmem>>, %arg3: memref<256x128xbf16, #tpu.memory_space<vmem>>, %arg4: memref<1x128xf32, #tpu.memory_space<vmem>>, %arg5: memref<128x128xf32, #tpu.memory_space<vmem>>, %arg6: memref<128x128xf32, #tpu.memory_space<vmem>>) attributes {dimension_semantics = [#tpu.dimension_semantics<parallel>, #tpu.dimension_semantics<arbitrary>], iteration_bounds = array<i64: 2, 1>, scalar_prefetch = 0 : i64, scratch_operands = 1 : i64, tpu.core_type = #tpu.core_type<tc>, window_params = [{transform_indices = @transform_0, window_bounds = array<i64: 128, 256>}, {pipeline_mode = #tpu.pipeline_mode<synchronous>, transform_indices = @transform_1, window_bounds = array<i64: 256, 128>}, {pipeline_mode = #tpu.pipeline_mode<synchronous>, transform_indices = @transform_2, window_bounds = array<i64: 1, 128>}, {transform_indices = @transform_3, window_bounds = array<i64: 128, 128>}]} {
    %c0_i32 = arith.constant 0 : i32
    %0 = arith.cmpi eq, %arg1, %c0_i32 : i32
    %1 = arith.extui %0 : i1 to i32
    %c0_i32_0 = arith.constant 0 : i32
    %2 = arith.cmpi ne, %1, %c0_i32_0 : i32
    scf.if %2 {
      %cst_9 = arith.constant 0.000000e+00 : f32
      %15 = vector.broadcast %cst_9 : f32 to vector<128x128xf32>
      %c0_10 = arith.constant 0 : index
      %c0_11 = arith.constant 0 : index
      %16 = vector.load %arg6[%c0_10, %c0_11] : memref<128x128xf32, #tpu.memory_space<vmem>>, vector<128x128xf32>
      tpu.vector_store %arg6[%c0_10, %c0_11], %15 {strides = array<i32>} : memref<128x128xf32, #tpu.memory_space<vmem>>, vector<128x128xf32>,
    } else {
    }
    %c256_i32 = arith.constant 256 : i32
    %3 = arith.muli %arg1, %c256_i32 : i32
    %4 = tpu.assume_multiple %3, 256 : i32
    %c0 = arith.constant 0 : index
    %c0_1 = arith.constant 0 : index
    %5 = vector.load %arg6[%c0, %c0_1] : memref<128x128xf32, #tpu.memory_space<vmem>>, vector<128x128xf32>
    %c0_2 = arith.constant 0 : index
    %c0_3 = arith.constant 0 : index
    %6 = vector.load %arg2[%c0_2, %c0_3] : memref<128x256xbf16, #tpu.memory_space<vmem>>, vector<128x256xbf16>
    %7 = arith.index_cast %4 : i32 to index
    %c0_4 = arith.constant 0 : index
    %8 = vector.load %arg3[%7, %c0_4] : memref<256x128xbf16, #tpu.memory_space<vmem>>, vector<256x128xbf16>
    %cst = arith.constant dense<0.000000e+00> : vector<128x128xf32>
    %9 = tpu.matmul %6, %8, %cst {dimension_numbers = #tpu.dot_dimension_numbers<[1], [0], [0], [1], [0, 0, 1, 1], [], []>} : vector<128x256xbf16>, vector<256x128xbf16>, vector<128x128xf32> -> vector<128x128xf32>
    %10 = arith.addf %5, %9 : vector<128x128xf32>
    %c0_5 = arith.constant 0 : index
    %c0_6 = arith.constant 0 : index
    %11 = vector.load %arg6[%c0_5, %c0_6] : memref<128x128xf32, #tpu.memory_space<vmem>>, vector<128x128xf32>
    tpu.vector_store %arg6[%c0_5, %c0_6], %10 {strides = array<i32>} : memref<128x128xf32, #tpu.memory_space<vmem>>, vector<128x128xf32>,
    %c0_i32_7 = arith.constant 0 : i32
    %12 = arith.cmpi eq, %arg1, %c0_i32_7 : i32
    %13 = arith.extui %12 : i1 to i32
    %c0_i32_8 = arith.constant 0 : i32
    %14 = arith.cmpi ne, %13, %c0_i32_8 : i32
    scf.if %14 {
      %c0_9 = arith.constant 0 : index
      %c0_10 = arith.constant 0 : index
      %15 = vector.load %arg6[%c0_9, %c0_10] : memref<128x128xf32, #tpu.memory_space<vmem>>, vector<128x128xf32>
      %c0_11 = arith.constant 0 : index
      %c0_12 = arith.constant 0 : index
      %16 = vector.load %arg4[%c0_11, %c0_12] : memref<1x128xf32, #tpu.memory_space<vmem>>, vector<1x128xf32>
      %17 = vector.broadcast %16 : vector<1x128xf32> to vector<128x128xf32>
      %18 = arith.addf %15, %17 : vector<128x128xf32>
      %cst_13 = arith.constant 0.000000e+00 : f32
      %19 = vector.broadcast %cst_13 : f32 to vector<128x128xf32>
      %20 = arith.maximumf %18, %19 : vector<128x128xf32>
      %c0_14 = arith.constant 0 : index
      %c0_15 = arith.constant 0 : index
      %21 = vector.load %arg5[%c0_14, %c0_15] : memref<128x128xf32, #tpu.memory_space<vmem>>, vector<128x128xf32>
      tpu.vector_store %arg5[%c0_14, %c0_15], %20 {strides = array<i32>} : memref<128x128xf32, #tpu.memory_space<vmem>>, vector<128x128xf32>,
    } else {
    }
    return
  }
  func.func @transform_0(%arg0: i32, %arg1: i32) -> (i32, i32) {
    %c0_i32 = arith.constant 0 : i32
    return %arg0, %arg1 : i32, i32
  }
  func.func @transform_1(%arg0: i32, %arg1: i32) -> (i32, i32) {
    %c0_i32 = arith.constant 0 : i32
    %c0_i32_0 = arith.constant 0 : i32
    %c0_i32_1 = arith.constant 0 : i32
    return %c0_i32, %c0_i32_0 : i32, i32
  }
  func.func @transform_2(%arg0: i32, %arg1: i32) -> (i32, i32) {
    %c0_i32 = arith.constant 0 : i32
    %c0_i32_0 = arith.constant 0 : i32
    %c0_i32_1 = arith.constant 0 : i32
    return %c0_i32, %c0_i32_0 : i32, i32
  }
  func.func @transform_3(%arg0: i32, %arg1: i32) -> (i32, i32) {
    %c0_i32 = arith.constant 0 : i32
    %c0_i32_0 = arith.constant 0 : i32
    return %arg0, %c0_i32 : i32, i32
  }
}

</mosaic_0001>

<llo_original>
// kernel: _lambda_.4
$region0: #{_lambda_.4}
  #allocation0 [shape = 'u32[]', space=smem, size = 0x4, offset = 0x4, fixed_abs, tag = 'smem constant byte address 0x4 - core index']
  #allocation1 [shape = 'u32[144,128]{1,0:T(1,128)}', space=vmem, size = 0x12000, scoped, tag = 'internal scratch']
  #allocation2 [shape = 'f32[128,128]{1,0:T(8,128)}', space=vmem, size = 0x10000, scoped, tag = 'scratch operand']
  %s0 = inlined_call_operand.vmem [shape: bf16[256,128], index: 0, kind: input, shape index: {}]
  %s1 = inlined_call_operand.vmem [shape: bf16[128,128], index: 1, kind: input, shape index: {}]
  %s2 = inlined_call_operand.vmem [shape: bf16[256,128], index: 2, kind: output, shape index: {}]
  %s3 = sld [smem:[#allocation0]]
  $region49: #{_lambda_.4} parent=0
    _
  %s5 = ssub.s32 1, %s3
  %s6 = scalar_select 0, %s5, %s3
  loop: start=0, step=1, limit=4
  $region2: #{_lambda_.4} parent=0 // loop_pre_header
    _
  $region3: #{_lambda_.4} parent=0 // loop_header
    %s8 = sphi 0, %s12
    %p9 = scmp.ge.s32.totalorder %s8, 4
    %s15 = sphi 0, %s27
    %s16 = sphi 0, %s23
    %s17 = sphi 0, %s15
    %s18 = sphi 0, %s16
    %s19 = sphi 0, %s17
    %s20 = sphi 0, %s18
    %s32 = sphi 0, %s34
    %s35 = sphi 0, %s32
    %s36 = sphi 0, %s35
    %s52 = sphi 0, %s36
    %s56 = sphi 0, %s56
    %s58 = sphi 0, %s56
    %s59 = sphi 0, %s58
    %s73 = sphi 0, %s59
    %s79 = sphi 0, %s81
    %s82 = sphi 0, %s79
    %s83 = sphi 0, %s82
    %s99 = sphi 0, %s83
  $region4: #{_lambda_.4} parent=0 // loop_header_branch
    %11 = sbr.rel (%p9) target = $region8
  $region5: #{_lambda_.4} parent=0 // loop_body
    %s13 = ssub.s32 %s8, 1
    %s14 = ssub.s32 %s8, 2
    %s21 = sadd.s32 1, %s16
    %p22 = scmp.ge.s32.totalorder %s21, 1
    %s23 = scalar_select %p22, 0, %s21
    %s24 = sadd.s32 1, %s15
    %s25 = scalar_select %p22, %s24, %s15
    %p26 = scmp.ge.s32.totalorder %s25, 2
    %s27 = scalar_select %p26, 0, %s25
    %s28 = ssub.s32 %s15, %s27
    %s29 = ssub.s32 %s16, %s23
    %s30 = sor.u32 %s28, %s29
    %p31 = scmp.eq.s32.totalorder %s30, 0
    %s33 = sadd.s32 %s32, 1
    %s34 = scalar_select %p31, %s32, %s33
    %p37 = pneg %p31
    %p38 = scmp.eq.s32.totalorder %s8, 1
    %p39 = por %p37, %p38
    %p40 = scmp.ne.s32.totalorder %s32, %s35
    %p41 = scmp.eq.s32.totalorder %s8, 0
    %p42 = por %p40, %p41
    %p43 = scmp.ne.s32.totalorder %s32, %s35
    %p44 = scmp.eq.s32.totalorder %s13, 1
    %p45 = por %p43, %p44
    %p46 = scmp.ne.s32.totalorder %s35, %s36
    %p47 = scmp.eq.s32.totalorder %s13, 0
    %p48 = por %p46, %p47
    %p49 = scmp.ne.s32.totalorder %s35, %s36
    %p50 = scmp.eq.s32.totalorder %s14, 1
    %p51 = por %p49, %p50
    %p53 = scmp.ne.s32.totalorder %s36, %s52
    %p54 = scmp.eq.s32.totalorder %s14, 0
    %p55 = por %p53, %p54
    %s57 = sadd.s32 %s56, 1
    %p60 = scmp.eq.s32.totalorder %s8, 1
    %p61 = scmp.ne.s32.totalorder %s56, %s58
    %p62 = scmp.eq.s32.totalorder %s8, 0
    %p63 = por %p61, %p62
    %p64 = scmp.ne.s32.totalorder %s56, %s58
    %p65 = scmp.eq.s32.totalorder %s13, 1
    %p66 = por %p64, %p65
    %p67 = scmp.ne.s32.totalorder %s58, %s59
    %p68 = scmp.eq.s32.totalorder %s13, 0
    %p69 = por %p67, %p68
    %p70 = scmp.ne.s32.totalorder %s58, %s59
    %p71 = scmp.eq.s32.totalorder %s14, 1
    %p72 = por %p70, %p71
    %p74 = scmp.ne.s32.totalorder %s59, %s73
    %p75 = scmp.eq.s32.totalorder %s14, 0
    %p76 = por %p74, %p75
    %s77 = ssub.s32 %s15, %s27
    %p78 = scmp.eq.s32.totalorder %s77, 0
    %s80 = sadd.s32 %s79, 1
    %s81 = scalar_select %p78, %s79, %s80
    %p84 = pneg %p78
    %p85 = scmp.eq.s32.totalorder %s8, 1
    %p86 = por %p84, %p85
    %p87 = scmp.ne.s32.totalorder %s79, %s82
    %p88 = scmp.eq.s32.totalorder %s8, 0
    %p89 = por %p87, %p88
    %p90 = scmp.ne.s32.totalorder %s79, %s82
    %p91 = scmp.eq.s32.totalorder %s13, 1
    %p92 = por %p90, %p91
    %p93 = scmp.ne.s32.totalorder %s82, %s83
    %p94 = scmp.eq.s32.totalorder %s13, 0
    %p95 = por %p93, %p94
    %p96 = scmp.ne.s32.totalorder %s82, %s83
    %p97 = scmp.eq.s32.totalorder %s14, 1
    %p98 = por %p96, %p97
    %p100 = scmp.ne.s32.totalorder %s83, %s99
    %p101 = scmp.eq.s32.totalorder %s14, 0
    %p102 = por %p100, %p101
    %p103 = scmp.le.s32.totalorder 1, %s8
    %p104 = scmp.lt.s32.totalorder %s8, 3
    %p105 = pnand %p103, %p104
    %p106 = pneg %p105
    // Predicated region
    $region9: #{_lambda_.4} parent=5 // pred_check
      _
    $region10: #{_lambda_.4} parent=5 // pred_check_branch
      %108 = sbr.rel (%p105) target = $region12
    $region11: #{_lambda_.4} parent=5 // pred_region
      %s109 = ssub.s32 %s8, 1
      // Predicated region
      $region13: #{_lambda_.4} parent=11 // pred_check
        %p110 = pneg %p69
      $region14: #{_lambda_.4} parent=11 // pred_check_branch
        %112 = sbr.rel (%p110) target = $region16
      $region15: #{_lambda_.4} parent=11 // pred_region
        _
      $region16: #{_lambda_.4} parent=11 // pred_fallthru
        _
    $region12: #{_lambda_.4} parent=5 // pred_fallthru
      _
    %p113 = scmp.lt.s32.totalorder %s8, 2
    // Predicated region
    $region17: #{_lambda_.4} parent=5 // pred_check
      %p114 = pneg %p113
    $region18: #{_lambda_.4} parent=5 // pred_check_branch
      %116 = sbr.rel (%p114) target = $region20
    $region19: #{_lambda_.4} parent=5 // pred_region
      // Predicated region
      $region21: #{_lambda_.4} parent=19 // pred_check
        %p117 = pneg %p42
      $region22: #{_lambda_.4} parent=19 // pred_check_branch
        %119 = sbr.rel (%p117) target = $region24
      $region23: #{_lambda_.4} parent=19 // pred_region
        %s120 = smul.u32 16, %s15
        %p121 = scmp.lt.s32.totalorder %s120, 31
        %s122 = scalar_select %p121, %s120, 31
        %p123 = scmp.lt.s32.totalorder %s16, 0
        %s124 = scalar_select %p123, %s16, 0
        %s125 = sadd.s32 %s124, %s122
        %s126 = smul.addr %s125, 4
        %s127 = scalar_lea.vmem %s0, %s126
        %s128 = smul.u32 16, %s15
      $region24: #{_lambda_.4} parent=19 // pred_fallthru
        _
    $region20: #{_lambda_.4} parent=5 // pred_fallthru
      _
    %p129 = scmp.le.s32.totalorder 1, %s8
    %p130 = scmp.lt.s32.totalorder %s8, 3
    %p131 = pnand %p129, %p130
    %p132 = pneg %p131
    // Predicated region
    $region25: #{_lambda_.4} parent=5 // pred_check
      _
    $region26: #{_lambda_.4} parent=5 // pred_check_branch
      %134 = sbr.rel (%p131) target = $region28
    $region27: #{_lambda_.4} parent=5 // pred_region
      %s135 = ssub.s32 %s8, 1
      %s136 = smul.u32 16, %s17
      %p137 = scmp.lt.s32.totalorder %s136, 31
      %s138 = scalar_select %p137, %s136, 31
      %p139 = scmp.lt.s32.totalorder %s18, 0
      %s140 = scalar_select %p139, %s18, 0
      %s141 = sadd.s32 %s140, %s138
      %s142 = smul.addr %s141, 4
      %s143 = scalar_lea.vmem %s0, %s142
      %p144 = pneg %p48
      %p145 = pneg %p45
      %p146 = pneg %p69
      %p147 = pneg %p66
      %p148 = pneg %p95
      %p149 = pneg %p92
      %s150 = smul.u32 16, %s17
      %p151 = scmp.lt.s32.totalorder %s150, 31
      %s152 = scalar_select %p151, %s150, 31
      %s153 = smul.addr %s152, 4
      %s154 = scalar_lea.vmem %s2, %s153
      %s155 = smul.u32 16, %s17
      %p156 = scmp.lt.s32.totalorder %s155, 31
      %s157 = scalar_select %p156, %s155, 31
      %p158 = scmp.lt.s32.totalorder %s18, 0
      %s159 = scalar_select %p158, %s18, 0
      %s160 = sadd.s32 %s159, %s157
      %s161 = smul.addr %s160, 4
      %s162 = scalar_lea.vmem %s0, %s161
      %s163 = smul.u32 16, %s17
      %s164 = smul.u32 16, %s17
      %p165 = scmp.lt.s32.totalorder %s164, 31
      %s166 = scalar_select %p165, %s164, 31
      %s167 = smul.addr %s166, 4
      %s168 = scalar_lea.vmem %s2, %s167
      %s169 = smul.u32 16, %s17
      %p171 = scmp.eq.s32.totalorder %s18, 0
      // Predicated region
      $region29: #{_lambda_.4} parent=27 // pred_check
        %p172 = pneg %p171
      $region30: #{_lambda_.4} parent=27 // pred_check_branch
        %174 = sbr.rel (%p172) target = $region32
      $region31: #{_lambda_.4} parent=27 // pred_region
        %175 = vst [vmem:[#allocation2] sm:$0xff] 0.0
        %176 = vst [vmem:[#allocation2 + $0x8] sm:$0xff] 0.0
        %177 = vst [vmem:[#allocation2 + $0x10] sm:$0xff] 0.0
        %178 = vst [vmem:[#allocation2 + $0x18] sm:$0xff] 0.0
        %179 = vst [vmem:[#allocation2 + $0x20] sm:$0xff] 0.0
        %180 = vst [vmem:[#allocation2 + $0x28] sm:$0xff] 0.0
        %181 = vst [vmem:[#allocation2 + $0x30] sm:$0xff] 0.0
        %182 = vst [vmem:[#allocation2 + $0x38] sm:$0xff] 0.0
        %183 = vst [vmem:[#allocation2 + $0x40] sm:$0xff] 0.0
        %184 = vst [vmem:[#allocation2 + $0x48] sm:$0xff] 0.0
        %185 = vst [vmem:[#allocation2 + $0x50] sm:$0xff] 0.0
        %186 = vst [vmem:[#allocation2 + $0x58] sm:$0xff] 0.0
        %187 = vst [vmem:[#allocation2 + $0x60] sm:$0xff] 0.0
        %188 = vst [vmem:[#allocation2 + $0x68] sm:$0xff] 0.0
        %189 = vst [vmem:[#allocation2 + $0x70] sm:$0xff] 0.0
        %190 = vst [vmem:[#allocation2 + $0x78] sm:$0xff] 0.0
      $region32: #{_lambda_.4} parent=27 // pred_fallthru
        _
      %s191 = smul.u32 %s18, 128
      %v192 = vld [vmem:[#allocation2] sm:$0xff]
      %v193 = vld [vmem:[#allocation2 + $0x8] sm:$0xff]
      %v194 = vld [vmem:[#allocation2 + $0x10] sm:$0xff]
      %v195 = vld [vmem:[#allocation2 + $0x18] sm:$0xff]
      %v196 = vld [vmem:[#allocation2 + $0x20] sm:$0xff]
      %v197 = vld [vmem:[#allocation2 + $0x28] sm:$0xff]
      %v198 = vld [vmem:[#allocation2 + $0x30] sm:$0xff]
      %v199 = vld [vmem:[#allocation2 + $0x38] sm:$0xff]
      %v200 = vld [vmem:[#allocation2 + $0x40] sm:$0xff]
      %v201 = vld [vmem:[#allocation2 + $0x48] sm:$0xff]
      %v202 = vld [vmem:[#allocation2 + $0x50] sm:$0xff]
      %v203 = vld [vmem:[#allocation2 + $0x58] sm:$0xff]
      %v204 = vld [vmem:[#allocation2 + $0x60] sm:$0xff]
      %v205 = vld [vmem:[#allocation2 + $0x68] sm:$0xff]
      %v206 = vld [vmem:[#allocation2 + $0x70] sm:$0xff]
      %v207 = vld [vmem:[#allocation2 + $0x78] sm:$0xff]
      %v208 = vld [vmem:[%s162] sm:$0xf]
      %v209 = vld [vmem:[%s162 + $0x4] sm:$0xf]
      %v210 = vld [vmem:[%s162 + $0x8] sm:$0xf]
      %v211 = vld [vmem:[%s162 + $0xc] sm:$0xf]
      %v212 = vld [vmem:[%s162 + $0x10] sm:$0xf]
      %v213 = vld [vmem:[%s162 + $0x14] sm:$0xf]
      %v214 = vld [vmem:[%s162 + $0x18] sm:$0xf]
      %v215 = vld [vmem:[%s162 + $0x1c] sm:$0xf]
      %v216 = vld [vmem:[%s162 + $0x20] sm:$0xf]
      %v217 = vld [vmem:[%s162 + $0x24] sm:$0xf]
      %v218 = vld [vmem:[%s162 + $0x28] sm:$0xf]
      %v219 = vld [vmem:[%s162 + $0x2c] sm:$0xf]
      %v220 = vld [vmem:[%s162 + $0x30] sm:$0xf]
      %v221 = vld [vmem:[%s162 + $0x34] sm:$0xf]
      %v222 = vld [vmem:[%s162 + $0x38] sm:$0xf]
      %v223 = vld [vmem:[%s162 + $0x3c] sm:$0xf]
      %s224 = sshra.s32 %s191, 3
      %s225 = sand.u32 %s191, 7
      %s226 = smul.addr %s224, 4
      %s227 = scalar_lea.vmem %s1, %s226
      %v228 = vld [vmem:[%s227] sm:$0xf]
      %v229 = vld [vmem:[%s227 + $0x4] sm:$0xf]
      %v230 = vld [vmem:[%s227 + $0x8] sm:$0xf]
      %v231 = vld [vmem:[%s227 + $0xc] sm:$0xf]
      %v232 = vld [vmem:[%s227 + $0x10] sm:$0xf]
      %v233 = vld [vmem:[%s227 + $0x14] sm:$0xf]
      %v234 = vld [vmem:[%s227 + $0x18] sm:$0xf]
      %v235 = vld [vmem:[%s227 + $0x1c] sm:$0xf]
      %v236 = vld [vmem:[%s227 + $0x20] sm:$0xf]
      %v237 = vld [vmem:[%s227 + $0x24] sm:$0xf]
      %v238 = vld [vmem:[%s227 + $0x28] sm:$0xf]
      %v239 = vld [vmem:[%s227 + $0x2c] sm:$0xf]
      %v240 = vld [vmem:[%s227 + $0x30] sm:$0xf]
      %v241 = vld [vmem:[%s227 + $0x34] sm:$0xf]
      %v242 = vld [vmem:[%s227 + $0x38] sm:$0xf]
      %v243 = vld [vmem:[%s227 + $0x3c] sm:$0xf]
      %v260 = vunpack.c.l.b16 %v208
      %v261 = vunpack.c.l.b16 %v209
      %v262 = vunpack.c.l.b16 %v210
      %v263 = vunpack.c.l.b16 %v211
      %v264 = vunpack.c.l.b16 %v212
      %v265 = vunpack.c.l.b16 %v213
      %v266 = vunpack.c.l.b16 %v214
      %v267 = vunpack.c.l.b16 %v215
      %v268 = vunpack.c.l.b16 %v216
      %v269 = vunpack.c.l.b16 %v217
      %v270 = vunpack.c.l.b16 %v218
      %v271 = vunpack.c.l.b16 %v219
      %v272 = vunpack.c.l.b16 %v220
      %v273 = vunpack.c.l.b16 %v221
      %v274 = vunpack.c.l.b16 %v222
      %v275 = vunpack.c.l.b16 %v223
      %v276 = vpack.c.b16 %v261, %v260
      %v277 = vpack.c.b16 %v263, %v262
      %v278 = vpack.c.b16 %v265, %v264
      %v279 = vpack.c.b16 %v267, %v266
      %v280 = vpack.c.b16 %v269, %v268
      %v281 = vpack.c.b16 %v271, %v270
      %v282 = vpack.c.b16 %v273, %v272
      %v283 = vpack.c.b16 %v275, %v274
      %v308 = vunpack.c.l.b16 %v228
      %v309 = vunpack.c.l.b16 %v229
      %v310 = vunpack.c.l.b16 %v230
      %v311 = vunpack.c.l.b16 %v231
      %v312 = vunpack.c.l.b16 %v232
      %v313 = vunpack.c.l.b16 %v233
      %v314 = vunpack.c.l.b16 %v234
      %v315 = vunpack.c.l.b16 %v235
      %v316 = vunpack.c.l.b16 %v236
      %v317 = vunpack.c.l.b16 %v237
      %v318 = vunpack.c.l.b16 %v238
      %v319 = vunpack.c.l.b16 %v239
      %v320 = vunpack.c.l.b16 %v240
      %v321 = vunpack.c.l.b16 %v241
      %v322 = vunpack.c.l.b16 %v242
      %v323 = vunpack.c.l.b16 %v243
      %v324 = vpack.c.b16 %v309, %v308
      %v325 = vpack.c.b16 %v311, %v310
      %v326 = vpack.c.b16 %v313, %v312
      %v327 = vpack.c.b16 %v315, %v314
      %v328 = vpack.c.b16 %v317, %v316
      %v329 = vpack.c.b16 %v319, %v318
      %v330 = vpack.c.b16 %v321, %v320
      %v331 = vpack.c.b16 %v323, %v322
      %340 = vmatprep.subr.bf16.mxu0 0
      %341 = vmatpush1.bf16.msra.mxu0 %v331
      %342 = vmatprep.subr.bf16.mxu0 0
      %343 = vmatpush1.bf16.msra.mxu0 %v330
      %344 = vmatprep.subr.bf16.mxu0 0
      %345 = vmatpush1.bf16.msra.mxu0 %v329
      %346 = vmatprep.subr.bf16.mxu0 0
      %347 = vmatpush1.bf16.msra.mxu0 %v328
      %348 = vmatprep.subr.bf16.mxu0 0
      %349 = vmatpush1.bf16.msra.mxu0 %v327
      %350 = vmatprep.subr.bf16.mxu0 0
      %351 = vmatpush1.bf16.msra.mxu0 %v326
      %352 = vmatprep.subr.bf16.mxu0 0
      %353 = vmatpush1.bf16.msra.mxu0 %v325
      %354 = vmatprep.subr.bf16.mxu0 0
      %355 = vmatpush1.bf16.msra.mxu0 %v324
      %356 = vmatprep.subr.bf16.mxu0 0
      %357 = vmatpush2.bf16.msra.mxu0 0
      %358 = vmatprep.subr.bf16.mxu0 0
      %359 = vmatpush2.bf16.msra.mxu0 0
      %360 = vmatprep.subr.bf16.mxu0 0
      %361 = vmatpush2.bf16.msra.mxu0 0
      %362 = vmatprep.subr.bf16.mxu0 0
      %363 = vmatpush2.bf16.msra.mxu0 0
      %364 = vmatprep.subr.bf16.mxu0 0
      %365 = vmatpush2.bf16.msra.mxu0 0
      %366 = vmatprep.subr.bf16.mxu0 0
      %367 = vmatpush2.bf16.msra.mxu0 0
      %368 = vmatprep.subr.bf16.mxu0 0
      %369 = vmatpush2.bf16.msra.mxu0 0
      %370 = vmatprep.subr.bf16.mxu0 0
      %371 = vmatpush2.bf16.msra.mxu0 0
      %372 = vmatprep.mubr.bf16.mxu0 0
      %373 = vmatmul.mubr.bf16.gmra.mxu0 %v276
      %v374 = vpop.f32.mrf.mxu0
      %v375 = vadd.f32 0.0, %v374
      %v376 = vpop.f32.mrf.mxu0
      %v377 = vpop.f32.mrf.mxu0
      %v378 = vadd.f32 0.0, %v377
      %v379 = vpop.f32.mrf.mxu0
      %380 = vmatprep.mubr.bf16.mxu0 0
      %381 = vmatmul.mubr.bf16.gmra.mxu0 %v277
      %v382 = vpop.f32.mrf.mxu0
      %v383 = vadd.f32 0.0, %v382
      %v384 = vpop.f32.mrf.mxu0
      %v385 = vpop.f32.mrf.mxu0
      %v386 = vadd.f32 0.0, %v385
      %v387 = vpop.f32.mrf.mxu0
      %388 = vmatprep.mubr.bf16.mxu0 0
      %389 = vmatmul.mubr.bf16.gmra.mxu0 %v278
      %v390 = vpop.f32.mrf.mxu0
      %v391 = vadd.f32 0.0, %v390
      %v392 = vpop.f32.mrf.mxu0
      %v393 = vpop.f32.mrf.mxu0
      %v394 = vadd.f32 0.0, %v393
      %v395 = vpop.f32.mrf.mxu0
      %396 = vmatprep.mubr.bf16.mxu0 0
      %397 = vmatmul.mubr.bf16.gmra.mxu0 %v279
      %v398 = vpop.f32.mrf.mxu0
      %v399 = vadd.f32 0.0, %v398
      %v400 = vpop.f32.mrf.mxu0
      %v401 = vpop.f32.mrf.mxu0
      %v402 = vadd.f32 0.0, %v401
      %v403 = vpop.f32.mrf.mxu0
      %404 = vmatprep.mubr.bf16.mxu0 0
      %405 = vmatmul.mubr.bf16.gmra.mxu0 %v280
      %v406 = vpop.f32.mrf.mxu0
      %v407 = vadd.f32 0.0, %v406
      %v408 = vpop.f32.mrf.mxu0
      %v409 = vpop.f32.mrf.mxu0
      %v410 = vadd.f32 0.0, %v409
      %v411 = vpop.f32.mrf.mxu0
      %412 = vmatprep.mubr.bf16.mxu0 0
      %413 = vmatmul.mubr.bf16.gmra.mxu0 %v281
      %v414 = vpop.f32.mrf.mxu0
      %v415 = vadd.f32 0.0, %v414
      %v416 = vpop.f32.mrf.mxu0
      %v417 = vpop.f32.mrf.mxu0
      %v418 = vadd.f32 0.0, %v417
      %v419 = vpop.f32.mrf.mxu0
      %420 = vmatprep.mubr.bf16.mxu0 0
      %421 = vmatmul.mubr.bf16.gmra.mxu0 %v282
      %v422 = vpop.f32.mrf.mxu0
      %v423 = vadd.f32 0.0, %v422
      %v424 = vpop.f32.mrf.mxu0
      %v425 = vpop.f32.mrf.mxu0
      %v426 = vadd.f32 0.0, %v425
      %v427 = vpop.f32.mrf.mxu0
      %428 = vmatprep.mubr.bf16.mxu0 0
      %429 = vmatmul.mubr.bf16.gmra.mxu0 %v283
      %v430 = vpop.f32.mrf.mxu0
      %v431 = vadd.f32 0.0, %v430
      %v432 = vpop.f32.mrf.mxu0
      %v433 = vpop.f32.mrf.mxu0
      %v434 = vadd.f32 0.0, %v433
      %v435 = vpop.f32.mrf.mxu0
      %436 = vdwg.mxu0
      %v437 = vadd.f32 %v192, %v375
      %v438 = vadd.f32 %v193, %v378
      %v439 = vadd.f32 %v194, %v383
      %v440 = vadd.f32 %v195, %v386
      %v441 = vadd.f32 %v196, %v391
      %v442 = vadd.f32 %v197, %v394
      %v443 = vadd.f32 %v198, %v399
      %v444 = vadd.f32 %v199, %v402
      %v445 = vadd.f32 %v200, %v407
      %v446 = vadd.f32 %v201, %v410
      %v447 = vadd.f32 %v202, %v415
      %v448 = vadd.f32 %v203, %v418
      %v449 = vadd.f32 %v204, %v423
      %v450 = vadd.f32 %v205, %v426
      %v451 = vadd.f32 %v206, %v431
      %v452 = vadd.f32 %v207, %v434
      %453 = vst [vmem:[#allocation2] sm:$0xff] %v437
      %454 = vst [vmem:[#allocation2 + $0x8] sm:$0xff] %v438
      %455 = vst [vmem:[#allocation2 + $0x10] sm:$0xff] %v439
      %456 = vst [vmem:[#allocation2 + $0x18] sm:$0xff] %v440
      %457 = vst [vmem:[#allocation2 + $0x20] sm:$0xff] %v441
      %458 = vst [vmem:[#allocation2 + $0x28] sm:$0xff] %v442
      %459 = vst [vmem:[#allocation2 + $0x30] sm:$0xff] %v443
      %460 = vst [vmem:[#allocation2 + $0x38] sm:$0xff] %v444
      %461 = vst [vmem:[#allocation2 + $0x40] sm:$0xff] %v445
      %462 = vst [vmem:[#allocation2 + $0x48] sm:$0xff] %v446
      %463 = vst [vmem:[#allocation2 + $0x50] sm:$0xff] %v447
      %464 = vst [vmem:[#allocation2 + $0x58] sm:$0xff] %v448
      %465 = vst [vmem:[#allocation2 + $0x60] sm:$0xff] %v449
      %466 = vst [vmem:[#allocation2 + $0x68] sm:$0xff] %v450
      %467 = vst [vmem:[#allocation2 + $0x70] sm:$0xff] %v451
      %468 = vst [vmem:[#allocation2 + $0x78] sm:$0xff] %v452
      // Predicated region
      $region33: #{_lambda_.4} parent=27 // pred_check
        %p469 = pneg %p171
      $region34: #{_lambda_.4} parent=27 // pred_check_branch
        %471 = sbr.rel (%p469) target = $region36
      $region35: #{_lambda_.4} parent=27 // pred_region
        %v472 = vld [vmem:[#allocation2] sm:$0xff]
        %v473 = vld [vmem:[#allocation2 + $0x8] sm:$0xff]
        %v474 = vld [vmem:[#allocation2 + $0x10] sm:$0xff]
        %v475 = vld [vmem:[#allocation2 + $0x18] sm:$0xff]
        %v476 = vld [vmem:[#allocation2 + $0x20] sm:$0xff]
        %v477 = vld [vmem:[#allocation2 + $0x28] sm:$0xff]
        %v478 = vld [vmem:[#allocation2 + $0x30] sm:$0xff]
        %v479 = vld [vmem:[#allocation2 + $0x38] sm:$0xff]
        %v480 = vld [vmem:[#allocation2 + $0x40] sm:$0xff]
        %v481 = vld [vmem:[#allocation2 + $0x48] sm:$0xff]
        %v482 = vld [vmem:[#allocation2 + $0x50] sm:$0xff]
        %v483 = vld [vmem:[#allocation2 + $0x58] sm:$0xff]
        %v484 = vld [vmem:[#allocation2 + $0x60] sm:$0xff]
        %v485 = vld [vmem:[#allocation2 + $0x68] sm:$0xff]
        %v486 = vld [vmem:[#allocation2 + $0x70] sm:$0xff]
        %v487 = vld [vmem:[#allocation2 + $0x78] sm:$0xff]
        %v488 = vpack.c.bf16 %v473, %v472
        %v489 = vpack.c.bf16 %v475, %v474
        %v490 = vpack.c.bf16 %v477, %v476
        %v491 = vpack.c.bf16 %v479, %v478
        %v492 = vpack.c.bf16 %v481, %v480
        %v493 = vpack.c.bf16 %v483, %v482
        %v494 = vpack.c.bf16 %v485, %v484
        %v495 = vpack.c.bf16 %v487, %v486
        %v504 = vunpack.c.l.b16 %v488
        %v505 = vunpack.c.h.b16 %v488
        %v506 = vunpack.c.l.b16 %v489
        %v507 = vunpack.c.h.b16 %v489
        %v508 = vunpack.c.l.b16 %v490
        %v509 = vunpack.c.h.b16 %v490
        %v510 = vunpack.c.l.b16 %v491
        %v511 = vunpack.c.h.b16 %v491
        %v512 = vunpack.c.l.b16 %v492
        %v513 = vunpack.c.h.b16 %v492
        %v514 = vunpack.c.l.b16 %v493
        %v515 = vunpack.c.h.b16 %v493
        %v516 = vunpack.c.l.b16 %v494
        %v517 = vunpack.c.h.b16 %v494
        %v518 = vunpack.c.l.b16 %v495
        %v519 = vunpack.c.h.b16 %v495
        %v520 = vpack.c.b16 %v504, %v504
        %v521 = vpack.c.b16 %v505, %v505
        %v522 = vpack.c.b16 %v506, %v506
        %v523 = vpack.c.b16 %v507, %v507
        %v524 = vpack.c.b16 %v508, %v508
        %v525 = vpack.c.b16 %v509, %v509
        %v526 = vpack.c.b16 %v510, %v510
        %v527 = vpack.c.b16 %v511, %v511
        %v528 = vpack.c.b16 %v512, %v512
        %v529 = vpack.c.b16 %v513, %v513
        %v530 = vpack.c.b16 %v514, %v514
        %v531 = vpack.c.b16 %v515, %v515
        %v532 = vpack.c.b16 %v516, %v516
        %v533 = vpack.c.b16 %v517, %v517
        %v534 = vpack.c.b16 %v518, %v518
        %v535 = vpack.c.b16 %v519, %v519
        %552 = vst [vmem:[%s168] sm:$0xf] %v520
        %553 = vst [vmem:[%s168 + $0x4] sm:$0xf] %v521
        %554 = vst [vmem:[%s168 + $0x8] sm:$0xf] %v522
        %555 = vst [vmem:[%s168 + $0xc] sm:$0xf] %v523
        %556 = vst [vmem:[%s168 + $0x10] sm:$0xf] %v524
        %557 = vst [vmem:[%s168 + $0x14] sm:$0xf] %v525
        %558 = vst [vmem:[%s168 + $0x18] sm:$0xf] %v526
        %559 = vst [vmem:[%s168 + $0x1c] sm:$0xf] %v527
        %560 = vst [vmem:[%s168 + $0x20] sm:$0xf] %v528
        %561 = vst [vmem:[%s168 + $0x24] sm:$0xf] %v529
        %562 = vst [vmem:[%s168 + $0x28] sm:$0xf] %v530
        %563 = vst [vmem:[%s168 + $0x2c] sm:$0xf] %v531
        %564 = vst [vmem:[%s168 + $0x30] sm:$0xf] %v532
        %565 = vst [vmem:[%s168 + $0x34] sm:$0xf] %v533
        %566 = vst [vmem:[%s168 + $0x38] sm:$0xf] %v534
        %567 = vst [vmem:[%s168 + $0x3c] sm:$0xf] %v535
      $region36: #{_lambda_.4} parent=27 // pred_fallthru
        _
      %s568 = smul.u32 16, %s17
      %p569 = scmp.lt.s32.totalorder %s568, 31
      %s570 = scalar_select %p569, %s568, 31
      %s571 = smul.addr %s570, 4
      %s572 = scalar_lea.vmem %s2, %s571
      // Predicated region
      $region37: #{_lambda_.4} parent=27 // pred_check
        %p573 = pneg %p92
      $region38: #{_lambda_.4} parent=27 // pred_check_branch
        %575 = sbr.rel (%p573) target = $region40
      $region39: #{_lambda_.4} parent=27 // pred_region
        %s576 = smul.u32 16, %s17
      $region40: #{_lambda_.4} parent=27 // pred_fallthru
        _
    $region28: #{_lambda_.4} parent=5 // pred_fallthru
      _
    %p577 = scmp.le.s32.totalorder 2, %s8
    // Predicated region
    $region41: #{_lambda_.4} parent=5 // pred_check
      %p578 = pneg %p577
    $region42: #{_lambda_.4} parent=5 // pred_check_branch
      %580 = sbr.rel (%p578) target = $region44
    $region43: #{_lambda_.4} parent=5 // pred_region
      %s581 = ssub.s32 %s8, 2
      // Predicated region
      $region45: #{_lambda_.4} parent=43 // pred_check
        %p582 = pneg %p98
      $region46: #{_lambda_.4} parent=43 // pred_check_branch
        %584 = sbr.rel (%p582) target = $region48
      $region47: #{_lambda_.4} parent=43 // pred_region
        %s585 = smul.u32 16, %s19
        %p586 = scmp.lt.s32.totalorder %s585, 31
        %s587 = scalar_select %p586, %s585, 31
        %s588 = smul.addr %s587, 4
        %s589 = scalar_lea.vmem %s2, %s588
      $region48: #{_lambda_.4} parent=43 // pred_fallthru
        _
    $region44: #{_lambda_.4} parent=5 // pred_fallthru
      _
  $region6: #{_lambda_.4} parent=0 // loop_footer
    %s12 = sadd.s32 1, %s8
  $region7: #{_lambda_.4} parent=0 // loop_footer_branch
    %7 = sbr.rel target = $region3
  $region8: #{_lambda_.4} parent=0 // loop_exit
    _

// kernel: _lambda_.7
$region0: #{_lambda_.7}
  #allocation0 [shape = 'u32[]', space=smem, size = 0x4, offset = 0x4, fixed_abs, tag = 'smem constant byte address 0x4 - core index']
  #allocation1 [shape = 'u32[144,128]{1,0:T(1,128)}', space=vmem, size = 0x12000, scoped, tag = 'internal scratch']
  #allocation2 [shape = 'f32[128,128]{1,0:T(8,128)}', space=vmem, size = 0x10000, scoped, tag = 'scratch operand']
  %s0 = inlined_call_operand.vmem [shape: bf16[256,256], index: 0, kind: input, shape index: {}]
  %s1 = inlined_call_operand.vmem [shape: bf16[256,128], index: 1, kind: input, shape index: {}]
  %s2 = inlined_call_operand.vmem [shape: f32[1,128], index: 2, kind: input, shape index: {}]
  %s3 = inlined_call_operand.vmem [shape: f32[256,128], index: 3, kind: output, shape index: {}]
  %s4 = sld [smem:[#allocation0]]
  $region53: #{_lambda_.7} parent=0
    _
  %s6 = ssub.s32 1, %s4
  %s7 = scalar_select 0, %s6, %s4
  loop: start=0, step=1, limit=4
  $region2: #{_lambda_.7} parent=0 // loop_pre_header
    _
  $region3: #{_lambda_.7} parent=0 // loop_header
    %s9 = sphi 0, %s13
    %p10 = scmp.ge.s32.totalorder %s9, 4
    %s16 = sphi 0, %s28
    %s17 = sphi 0, %s24
    %s18 = sphi 0, %s16
    %s19 = sphi 0, %s17
    %s20 = sphi 0, %s18
    %s21 = sphi 0, %s19
    %s33 = sphi 0, %s35
    %s36 = sphi 0, %s33
    %s37 = sphi 0, %s36
    %s53 = sphi 0, %s37
    %s57 = sphi 0, %s57
    %s59 = sphi 0, %s57
    %s60 = sphi 0, %s59
    %s74 = sphi 0, %s60
    %s78 = sphi 0, %s78
    %s80 = sphi 0, %s78
    %s81 = sphi 0, %s80
    %s95 = sphi 0, %s81
    %s101 = sphi 0, %s103
    %s104 = sphi 0, %s101
    %s105 = sphi 0, %s104
    %s121 = sphi 0, %s105
  $region4: #{_lambda_.7} parent=0 // loop_header_branch
    %12 = sbr.rel (%p10) target = $region8
  $region5: #{_lambda_.7} parent=0 // loop_body
    %s14 = ssub.s32 %s9, 1
    %s15 = ssub.s32 %s9, 2
    %s22 = sadd.s32 1, %s17
    %p23 = scmp.ge.s32.totalorder %s22, 1
    %s24 = scalar_select %p23, 0, %s22
    %s25 = sadd.s32 1, %s16
    %s26 = scalar_select %p23, %s25, %s16
    %p27 = scmp.ge.s32.totalorder %s26, 2
    %s28 = scalar_select %p27, 0, %s26
    %s29 = ssub.s32 %s16, %s28
    %s30 = ssub.s32 %s17, %s24
    %s31 = sor.u32 %s29, %s30
    %p32 = scmp.eq.s32.totalorder %s31, 0
    %s34 = sadd.s32 %s33, 1
    %s35 = scalar_select %p32, %s33, %s34
    %p38 = pneg %p32
    %p39 = scmp.eq.s32.totalorder %s9, 1
    %p40 = por %p38, %p39
    %p41 = scmp.ne.s32.totalorder %s33, %s36
    %p42 = scmp.eq.s32.totalorder %s9, 0
    %p43 = por %p41, %p42
    %p44 = scmp.ne.s32.totalorder %s33, %s36
    %p45 = scmp.eq.s32.totalorder %s14, 1
    %p46 = por %p44, %p45
    %p47 = scmp.ne.s32.totalorder %s36, %s37
    %p48 = scmp.eq.s32.totalorder %s14, 0
    %p49 = por %p47, %p48
    %p50 = scmp.ne.s32.totalorder %s36, %s37
    %p51 = scmp.eq.s32.totalorder %s15, 1
    %p52 = por %p50, %p51
    %p54 = scmp.ne.s32.totalorder %s37, %s53
    %p55 = scmp.eq.s32.totalorder %s15, 0
    %p56 = por %p54, %p55
    %s58 = sadd.s32 %s57, 1
    %p61 = scmp.eq.s32.totalorder %s9, 1
    %p62 = scmp.ne.s32.totalorder %s57, %s59
    %p63 = scmp.eq.s32.totalorder %s9, 0
    %p64 = por %p62, %p63
    %p65 = scmp.ne.s32.totalorder %s57, %s59
    %p66 = scmp.eq.s32.totalorder %s14, 1
    %p67 = por %p65, %p66
    %p68 = scmp.ne.s32.totalorder %s59, %s60
    %p69 = scmp.eq.s32.totalorder %s14, 0
    %p70 = por %p68, %p69
    %p71 = scmp.ne.s32.totalorder %s59, %s60
    %p72 = scmp.eq.s32.totalorder %s15, 1
    %p73 = por %p71, %p72
    %p75 = scmp.ne.s32.totalorder %s60, %s74
    %p76 = scmp.eq.s32.totalorder %s15, 0
    %p77 = por %p75, %p76
    %s79 = sadd.s32 %s78, 1
    %p82 = scmp.eq.s32.totalorder %s9, 1
    %p83 = scmp.ne.s32.totalorder %s78, %s80
    %p84 = scmp.eq.s32.totalorder %s9, 0
    %p85 = por %p83, %p84
    %p86 = scmp.ne.s32.totalorder %s78, %s80
    %p87 = scmp.eq.s32.totalorder %s14, 1
    %p88 = por %p86, %p87
    %p89 = scmp.ne.s32.totalorder %s80, %s81
    %p90 = scmp.eq.s32.totalorder %s14, 0
    %p91 = por %p89, %p90
    %p92 = scmp.ne.s32.totalorder %s80, %s81
    %p93 = scmp.eq.s32.totalorder %s15, 1
    %p94 = por %p92, %p93
    %p96 = scmp.ne.s32.totalorder %s81, %s95
    %p97 = scmp.eq.s32.totalorder %s15, 0
    %p98 = por %p96, %p97
    %s99 = ssub.s32 %s16, %s28
    %p100 = scmp.eq.s32.totalorder %s99, 0
    %s102 = sadd.s32 %s101, 1
    %s103 = scalar_select %p100, %s101, %s102
    %p106 = pneg %p100
    %p107 = scmp.eq.s32.totalorder %s9, 1
    %p108 = por %p106, %p107
    %p109 = scmp.ne.s32.totalorder %s101, %s104
    %p110 = scmp.eq.s32.totalorder %s9, 0
    %p111 = por %p109, %p110
    %p112 = scmp.ne.s32.totalorder %s101, %s104
    %p113 = scmp.eq.s32.totalorder %s14, 1
    %p114 = por %p112, %p113
    %p115 = scmp.ne.s32.totalorder %s104, %s105
    %p116 = scmp.eq.s32.totalorder %s14, 0
    %p117 = por %p115, %p116
    %p118 = scmp.ne.s32.totalorder %s104, %s105
    %p119 = scmp.eq.s32.totalorder %s15, 1
    %p120 = por %p118, %p119
    %p122 = scmp.ne.s32.totalorder %s105, %s121
    %p123 = scmp.eq.s32.totalorder %s15, 0
    %p124 = por %p122, %p123
    %p125 = scmp.le.s32.totalorder 1, %s9
    %p126 = scmp.lt.s32.totalorder %s9, 3
    %p127 = pnand %p125, %p126
    %p128 = pneg %p127
    // Predicated region
    $region9: #{_lambda_.7} parent=5 // pred_check
      _
    $region10: #{_lambda_.7} parent=5 // pred_check_branch
      %130 = sbr.rel (%p127) target = $region12
    $region11: #{_lambda_.7} parent=5 // pred_region
      %s131 = ssub.s32 %s9, 1
      // Predicated region
      $region13: #{_lambda_.7} parent=11 // pred_check
        %p132 = pneg %p70
      $region14: #{_lambda_.7} parent=11 // pred_check_branch
        %134 = sbr.rel (%p132) target = $region16
      $region15: #{_lambda_.7} parent=11 // pred_region
        _
      $region16: #{_lambda_.7} parent=11 // pred_fallthru
        _
      // Predicated region
      $region17: #{_lambda_.7} parent=11 // pred_check
        %p135 = pneg %p91
      $region18: #{_lambda_.7} parent=11 // pred_check_branch
        %137 = sbr.rel (%p135) target = $region20
      $region19: #{_lambda_.7} parent=11 // pred_region
        _
      $region20: #{_lambda_.7} parent=11 // pred_fallthru
        _
    $region12: #{_lambda_.7} parent=5 // pred_fallthru
      _
    %p138 = scmp.lt.s32.totalorder %s9, 2
    // Predicated region
    $region21: #{_lambda_.7} parent=5 // pred_check
      %p139 = pneg %p138
    $region22: #{_lambda_.7} parent=5 // pred_check_branch
      %141 = sbr.rel (%p139) target = $region24
    $region23: #{_lambda_.7} parent=5 // pred_region
      // Predicated region
      $region25: #{_lambda_.7} parent=23 // pred_check
        %p142 = pneg %p43
      $region26: #{_lambda_.7} parent=23 // pred_check_branch
        %144 = sbr.rel (%p142) target = $region28
      $region27: #{_lambda_.7} parent=23 // pred_region
        %s145 = smul.u32 16, %s16
        %s146 = smul.u32 2, %s17
        %p147 = scmp.lt.s32.totalorder %s145, 31
        %s148 = scalar_select %p147, %s145, 31
        %p149 = scmp.lt.s32.totalorder %s146, 1
        %s150 = scalar_select %p149, %s146, 1
        %s151 = smul.addr %s148, 2
        %s152 = sadd.s32 %s150, %s151
        %s153 = smul.addr %s152, 4
        %s154 = scalar_lea.vmem %s0, %s153
        %s155 = smul.u32 16, %s16
        %s156 = smul.u32 2, %s17
      $region28: #{_lambda_.7} parent=23 // pred_fallthru
        _
    $region24: #{_lambda_.7} parent=5 // pred_fallthru
      _
    %p157 = scmp.le.s32.totalorder 1, %s9
    %p158 = scmp.lt.s32.totalorder %s9, 3
    %p159 = pnand %p157, %p158
    %p160 = pneg %p159
    // Predicated region
    $region29: #{_lambda_.7} parent=5 // pred_check
      _
    $region30: #{_lambda_.7} parent=5 // pred_check_branch
      %162 = sbr.rel (%p159) target = $region32
    $region31: #{_lambda_.7} parent=5 // pred_region
      %s163 = ssub.s32 %s9, 1
      %s164 = smul.u32 16, %s18
      %s165 = smul.u32 2, %s19
      %p166 = scmp.lt.s32.totalorder %s164, 31
      %s167 = scalar_select %p166, %s164, 31
      %p168 = scmp.lt.s32.totalorder %s165, 1
      %s169 = scalar_select %p168, %s165, 1
      %s170 = smul.addr %s167, 2
      %s171 = sadd.s32 %s169, %s170
      %s172 = smul.addr %s171, 4
      %s173 = scalar_lea.vmem %s0, %s172
      %p174 = pneg %p49
      %p175 = pneg %p46
      %p176 = pneg %p70
      %p177 = pneg %p67
      %p178 = pneg %p91
      %p179 = pneg %p88
      %p180 = pneg %p117
      %p181 = pneg %p114
      %s182 = smul.u32 16, %s18
      %p183 = scmp.lt.s32.totalorder %s182, 31
      %s184 = scalar_select %p183, %s182, 31
      %s185 = smul.addr %s184, 8
      %s186 = scalar_lea.vmem %s3, %s185
      %s187 = smul.u32 16, %s18
      %s188 = smul.u32 2, %s19
      %p189 = scmp.lt.s32.totalorder %s187, 31
      %s190 = scalar_select %p189, %s187, 31
      %p191 = scmp.lt.s32.totalorder %s188, 1
      %s192 = scalar_select %p191, %s188, 1
      %s193 = smul.addr %s190, 2
      %s194 = sadd.s32 %s192, %s193
      %s195 = smul.addr %s194, 4
      %s196 = scalar_lea.vmem %s0, %s195
      %s197 = smul.u32 16, %s18
      %s198 = smul.u32 2, %s19
      %s199 = smul.u32 16, %s18
      %p200 = scmp.lt.s32.totalorder %s199, 31
      %s201 = scalar_select %p200, %s199, 31
      %s202 = smul.addr %s201, 8
      %s203 = scalar_lea.vmem %s3, %s202
      %s204 = smul.u32 16, %s18
      %p206 = scmp.eq.s32.totalorder %s19, 0
      // Predicated region
      $region33: #{_lambda_.7} parent=31 // pred_check
        %p207 = pneg %p206
      $region34: #{_lambda_.7} parent=31 // pred_check_branch
        %209 = sbr.rel (%p207) target = $region36
      $region35: #{_lambda_.7} parent=31 // pred_region
        %210 = vst [vmem:[#allocation2] sm:$0xff] 0.0
        %211 = vst [vmem:[#allocation2 + $0x8] sm:$0xff] 0.0
        %212 = vst [vmem:[#allocation2 + $0x10] sm:$0xff] 0.0
        %213 = vst [vmem:[#allocation2 + $0x18] sm:$0xff] 0.0
        %214 = vst [vmem:[#allocation2 + $0x20] sm:$0xff] 0.0
        %215 = vst [vmem:[#allocation2 + $0x28] sm:$0xff] 0.0
        %216 = vst [vmem:[#allocation2 + $0x30] sm:$0xff] 0.0
        %217 = vst [vmem:[#allocation2 + $0x38] sm:$0xff] 0.0
        %218 = vst [vmem:[#allocation2 + $0x40] sm:$0xff] 0.0
        %219 = vst [vmem:[#allocation2 + $0x48] sm:$0xff] 0.0
        %220 = vst [vmem:[#allocation2 + $0x50] sm:$0xff] 0.0
        %221 = vst [vmem:[#allocation2 + $0x58] sm:$0xff] 0.0
        %222 = vst [vmem:[#allocation2 + $0x60] sm:$0xff] 0.0
        %223 = vst [vmem:[#allocation2 + $0x68] sm:$0xff] 0.0
        %224 = vst [vmem:[#allocation2 + $0x70] sm:$0xff] 0.0
        %225 = vst [vmem:[#allocation2 + $0x78] sm:$0xff] 0.0
      $region36: #{_lambda_.7} parent=31 // pred_fallthru
        _
      %s226 = smul.u32 %s19, 256
      %v227 = vld [vmem:[#allocation2] sm:$0xff]
      %v228 = vld [vmem:[#allocation2 + $0x8] sm:$0xff]
      %v229 = vld [vmem:[#allocation2 + $0x10] sm:$0xff]
      %v230 = vld [vmem:[#allocation2 + $0x18] sm:$0xff]
      %v231 = vld [vmem:[#allocation2 + $0x20] sm:$0xff]
      %v232 = vld [vmem:[#allocation2 + $0x28] sm:$0xff]
      %v233 = vld [vmem:[#allocation2 + $0x30] sm:$0xff]
      %v234 = vld [vmem:[#allocation2 + $0x38] sm:$0xff]
      %v235 = vld [vmem:[#allocation2 + $0x40] sm:$0xff]
      %v236 = vld [vmem:[#allocation2 + $0x48] sm:$0xff]
      %v237 = vld [vmem:[#allocation2 + $0x50] sm:$0xff]
      %v238 = vld [vmem:[#allocation2 + $0x58] sm:$0xff]
      %v239 = vld [vmem:[#allocation2 + $0x60] sm:$0xff]
      %v240 = vld [vmem:[#allocation2 + $0x68] sm:$0xff]
      %v241 = vld [vmem:[#allocation2 + $0x70] sm:$0xff]
      %v242 = vld [vmem:[#allocation2 + $0x78] sm:$0xff]
      %v243 = vld [vmem:[%s196] sm:$0xff]
      %v244 = vld [vmem:[%s196 + $0x8] sm:$0xff]
      %v245 = vld [vmem:[%s196 + $0x10] sm:$0xff]
      %v246 = vld [vmem:[%s196 + $0x18] sm:$0xff]
      %v247 = vld [vmem:[%s196 + $0x20] sm:$0xff]
      %v248 = vld [vmem:[%s196 + $0x28] sm:$0xff]
      %v249 = vld [vmem:[%s196 + $0x30] sm:$0xff]
      %v250 = vld [vmem:[%s196 + $0x38] sm:$0xff]
      %v251 = vld [vmem:[%s196 + $0x40] sm:$0xff]
      %v252 = vld [vmem:[%s196 + $0x48] sm:$0xff]
      %v253 = vld [vmem:[%s196 + $0x50] sm:$0xff]
      %v254 = vld [vmem:[%s196 + $0x58] sm:$0xff]
      %v255 = vld [vmem:[%s196 + $0x60] sm:$0xff]
      %v256 = vld [vmem:[%s196 + $0x68] sm:$0xff]
      %v257 = vld [vmem:[%s196 + $0x70] sm:$0xff]
      %v258 = vld [vmem:[%s196 + $0x78] sm:$0xff]
      %s259 = sshra.s32 %s226, 3
      %s260 = sand.u32 %s226, 7
      %s261 = smul.addr %s259, 4
      %s262 = scalar_lea.vmem %s1, %s261
      %v263 = vld [vmem:[%s262] sm:$0xf]
      %v264 = vld [vmem:[%s262 + $0x4] sm:$0xf]
      %v265 = vld [vmem:[%s262 + $0x8] sm:$0xf]
      %v266 = vld [vmem:[%s262 + $0xc] sm:$0xf]
      %v267 = vld [vmem:[%s262 + $0x10] sm:$0xf]
      %v268 = vld [vmem:[%s262 + $0x14] sm:$0xf]
      %v269 = vld [vmem:[%s262 + $0x18] sm:$0xf]
      %v270 = vld [vmem:[%s262 + $0x1c] sm:$0xf]
      %v271 = vld [vmem:[%s262 + $0x20] sm:$0xf]
      %v272 = vld [vmem:[%s262 + $0x24] sm:$0xf]
      %v273 = vld [vmem:[%s262 + $0x28] sm:$0xf]
      %v274 = vld [vmem:[%s262 + $0x2c] sm:$0xf]
      %v275 = vld [vmem:[%s262 + $0x30] sm:$0xf]
      %v276 = vld [vmem:[%s262 + $0x34] sm:$0xf]
      %v277 = vld [vmem:[%s262 + $0x38] sm:$0xf]
      %v278 = vld [vmem:[%s262 + $0x3c] sm:$0xf]
      %v279 = vld [vmem:[%s262 + $0x40] sm:$0xf]
      %v280 = vld [vmem:[%s262 + $0x44] sm:$0xf]
      %v281 = vld [vmem:[%s262 + $0x48] sm:$0xf]
      %v282 = vld [vmem:[%s262 + $0x4c] sm:$0xf]
      %v283 = vld [vmem:[%s262 + $0x50] sm:$0xf]
      %v284 = vld [vmem:[%s262 + $0x54] sm:$0xf]
      %v285 = vld [vmem:[%s262 + $0x58] sm:$0xf]
      %v286 = vld [vmem:[%s262 + $0x5c] sm:$0xf]
      %v287 = vld [vmem:[%s262 + $0x60] sm:$0xf]
      %v288 = vld [vmem:[%s262 + $0x64] sm:$0xf]
      %v289 = vld [vmem:[%s262 + $0x68] sm:$0xf]
      %v290 = vld [vmem:[%s262 + $0x6c] sm:$0xf]
      %v291 = vld [vmem:[%s262 + $0x70] sm:$0xf]
      %v292 = vld [vmem:[%s262 + $0x74] sm:$0xf]
      %v293 = vld [vmem:[%s262 + $0x78] sm:$0xf]
      %v294 = vld [vmem:[%s262 + $0x7c] sm:$0xf]
      %v311 = vunpack.c.l.b16 %v243
      %v312 = vunpack.c.h.b16 %v243
      %v313 = vunpack.c.l.b16 %v244
      %v314 = vunpack.c.h.b16 %v244
      %v315 = vunpack.c.l.b16 %v245
      %v316 = vunpack.c.h.b16 %v245
      %v317 = vunpack.c.l.b16 %v246
      %v318 = vunpack.c.h.b16 %v246
      %v319 = vunpack.c.l.b16 %v247
      %v320 = vunpack.c.h.b16 %v247
      %v321 = vunpack.c.l.b16 %v248
      %v322 = vunpack.c.h.b16 %v248
      %v323 = vunpack.c.l.b16 %v249
      %v324 = vunpack.c.h.b16 %v249
      %v325 = vunpack.c.l.b16 %v250
      %v326 = vunpack.c.h.b16 %v250
      %v327 = vunpack.c.l.b16 %v251
      %v328 = vunpack.c.h.b16 %v251
      %v329 = vunpack.c.l.b16 %v252
      %v330 = vunpack.c.h.b16 %v252
      %v331 = vunpack.c.l.b16 %v253
      %v332 = vunpack.c.h.b16 %v253
      %v333 = vunpack.c.l.b16 %v254
      %v334 = vunpack.c.h.b16 %v254
      %v335 = vunpack.c.l.b16 %v255
      %v336 = vunpack.c.h.b16 %v255
      %v337 = vunpack.c.l.b16 %v256
      %v338 = vunpack.c.h.b16 %v256
      %v339 = vunpack.c.l.b16 %v257
      %v340 = vunpack.c.h.b16 %v257
      %v341 = vunpack.c.l.b16 %v258
      %v342 = vunpack.c.h.b16 %v258
      %v343 = vpack.c.b16 %v313, %v311
      %v344 = vpack.c.b16 %v314, %v312
      %v345 = vpack.c.b16 %v317, %v315
      %v346 = vpack.c.b16 %v318, %v316
      %v347 = vpack.c.b16 %v321, %v319
      %v348 = vpack.c.b16 %v322, %v320
      %v349 = vpack.c.b16 %v325, %v323
      %v350 = vpack.c.b16 %v326, %v324
      %v351 = vpack.c.b16 %v329, %v327
      %v352 = vpack.c.b16 %v330, %v328
      %v353 = vpack.c.b16 %v333, %v331
      %v354 = vpack.c.b16 %v334, %v332
      %v355 = vpack.c.b16 %v337, %v335
      %v356 = vpack.c.b16 %v338, %v336
      %v357 = vpack.c.b16 %v341, %v339
      %v358 = vpack.c.b16 %v342, %v340
      %v407 = vunpack.c.l.b16 %v263
      %v408 = vunpack.c.l.b16 %v264
      %v409 = vunpack.c.l.b16 %v265
      %v410 = vunpack.c.l.b16 %v266
      %v411 = vunpack.c.l.b16 %v267
      %v412 = vunpack.c.l.b16 %v268
      %v413 = vunpack.c.l.b16 %v269
      %v414 = vunpack.c.l.b16 %v270
      %v415 = vunpack.c.l.b16 %v271
      %v416 = vunpack.c.l.b16 %v272
      %v417 = vunpack.c.l.b16 %v273
      %v418 = vunpack.c.l.b16 %v274
      %v419 = vunpack.c.l.b16 %v275
      %v420 = vunpack.c.l.b16 %v276
      %v421 = vunpack.c.l.b16 %v277
      %v422 = vunpack.c.l.b16 %v278
      %v423 = vunpack.c.l.b16 %v279
      %v424 = vunpack.c.l.b16 %v280
      %v425 = vunpack.c.l.b16 %v281
      %v426 = vunpack.c.l.b16 %v282
      %v427 = vunpack.c.l.b16 %v283
      %v428 = vunpack.c.l.b16 %v284
      %v429 = vunpack.c.l.b16 %v285
      %v430 = vunpack.c.l.b16 %v286
      %v431 = vunpack.c.l.b16 %v287
      %v432 = vunpack.c.l.b16 %v288
      %v433 = vunpack.c.l.b16 %v289
      %v434 = vunpack.c.l.b16 %v290
      %v435 = vunpack.c.l.b16 %v291
      %v436 = vunpack.c.l.b16 %v292
      %v437 = vunpack.c.l.b16 %v293
      %v438 = vunpack.c.l.b16 %v294
      %v439 = vpack.c.b16 %v408, %v407
      %v440 = vpack.c.b16 %v410, %v409
      %v441 = vpack.c.b16 %v412, %v411
      %v442 = vpack.c.b16 %v414, %v413
      %v443 = vpack.c.b16 %v416, %v415
      %v444 = vpack.c.b16 %v418, %v417
      %v445 = vpack.c.b16 %v420, %v419
      %v446 = vpack.c.b16 %v422, %v421
      %v447 = vpack.c.b16 %v424, %v423
      %v448 = vpack.c.b16 %v426, %v425
      %v449 = vpack.c.b16 %v428, %v427
      %v450 = vpack.c.b16 %v430, %v429
      %v451 = vpack.c.b16 %v432, %v431
      %v452 = vpack.c.b16 %v434, %v433
      %v453 = vpack.c.b16 %v436, %v435
      %v454 = vpack.c.b16 %v438, %v437
      %471 = vmatprep.subr.bf16.mxu0 0
      %472 = vmatpush1.bf16.msra.mxu0 %v446
      %473 = vmatprep.subr.bf16.mxu0 0
      %474 = vmatpush1.bf16.msra.mxu0 %v445
      %475 = vmatprep.subr.bf16.mxu0 0
      %476 = vmatpush1.bf16.msra.mxu0 %v444
      %477 = vmatprep.subr.bf16.mxu0 0
      %478 = vmatpush1.bf16.msra.mxu0 %v443
      %479 = vmatprep.subr.bf16.mxu0 0
      %480 = vmatpush1.bf16.msra.mxu0 %v442
      %481 = vmatprep.subr.bf16.mxu0 0
      %482 = vmatpush1.bf16.msra.mxu0 %v441
      %483 = vmatprep.subr.bf16.mxu0 0
      %484 = vmatpush1.bf16.msra.mxu0 %v440
      %485 = vmatprep.subr.bf16.mxu0 0
      %486 = vmatpush1.bf16.msra.mxu0 %v439
      %487 = vmatprep.subr.bf16.mxu0 0
      %488 = vmatpush2.bf16.msra.mxu0 %v454
      %489 = vmatprep.subr.bf16.mxu0 0
      %490 = vmatpush2.bf16.msra.mxu0 %v453
      %491 = vmatprep.subr.bf16.mxu0 0
      %492 = vmatpush2.bf16.msra.mxu0 %v452
      %493 = vmatprep.subr.bf16.mxu0 0
      %494 = vmatpush2.bf16.msra.mxu0 %v451
      %495 = vmatprep.subr.bf16.mxu0 0
      %496 = vmatpush2.bf16.msra.mxu0 %v450
      %497 = vmatprep.subr.bf16.mxu0 0
      %498 = vmatpush2.bf16.msra.mxu0 %v449
      %499 = vmatprep.subr.bf16.mxu0 0
      %500 = vmatpush2.bf16.msra.mxu0 %v448
      %501 = vmatprep.subr.bf16.mxu0 0
      %502 = vmatpush2.bf16.msra.mxu0 %v447
      %503 = vmatprep.mubr.bf16.mxu0 %v344
      %504 = vmatmul.mubr.bf16.gmra.mxu0 %v343
      %v505 = vpop.f32.mrf.mxu0
      %v506 = vadd.f32 0.0, %v505
      %v507 = vpop.f32.mrf.mxu0
      %v508 = vpop.f32.mrf.mxu0
      %v509 = vadd.f32 0.0, %v508
      %v510 = vpop.f32.mrf.mxu0
      %511 = vmatprep.mubr.bf16.mxu0 %v346
      %512 = vmatmul.mubr.bf16.gmra.mxu0 %v345
      %v513 = vpop.f32.mrf.mxu0
      %v514 = vadd.f32 0.0, %v513
      %v515 = vpop.f32.mrf.mxu0
      %v516 = vpop.f32.mrf.mxu0
      %v517 = vadd.f32 0.0, %v516
      %v518 = vpop.f32.mrf.mxu0
      %519 = vmatprep.mubr.bf16.mxu0 %v348
      %520 = vmatmul.mubr.bf16.gmra.mxu0 %v347
      %v521 = vpop.f32.mrf.mxu0
      %v522 = vadd.f32 0.0, %v521
      %v523 = vpop.f32.mrf.mxu0
      %v524 = vpop.f32.mrf.mxu0
      %v525 = vadd.f32 0.0, %v524
      %v526 = vpop.f32.mrf.mxu0
      %527 = vmatprep.mubr.bf16.mxu0 %v350
      %528 = vmatmul.mubr.bf16.gmra.mxu0 %v349
      %v529 = vpop.f32.mrf.mxu0
      %v530 = vadd.f32 0.0, %v529
      %v531 = vpop.f32.mrf.mxu0
      %v532 = vpop.f32.mrf.mxu0
      %v533 = vadd.f32 0.0, %v532
      %v534 = vpop.f32.mrf.mxu0
      %535 = vmatprep.mubr.bf16.mxu0 %v352
      %536 = vmatmul.mubr.bf16.gmra.mxu0 %v351
      %v537 = vpop.f32.mrf.mxu0
      %v538 = vadd.f32 0.0, %v537
      %v539 = vpop.f32.mrf.mxu0
      %v540 = vpop.f32.mrf.mxu0
      %v541 = vadd.f32 0.0, %v540
      %v542 = vpop.f32.mrf.mxu0
      %543 = vmatprep.mubr.bf16.mxu0 %v354
      %544 = vmatmul.mubr.bf16.gmra.mxu0 %v353
      %v545 = vpop.f32.mrf.mxu0
      %v546 = vadd.f32 0.0, %v545
      %v547 = vpop.f32.mrf.mxu0
      %v548 = vpop.f32.mrf.mxu0
      %v549 = vadd.f32 0.0, %v548
      %v550 = vpop.f32.mrf.mxu0
      %551 = vmatprep.mubr.bf16.mxu0 %v356
      %552 = vmatmul.mubr.bf16.gmra.mxu0 %v355
      %v553 = vpop.f32.mrf.mxu0
      %v554 = vadd.f32 0.0, %v553
      %v555 = vpop.f32.mrf.mxu0
      %v556 = vpop.f32.mrf.mxu0
      %v557 = vadd.f32 0.0, %v556
      %v558 = vpop.f32.mrf.mxu0
      %559 = vmatprep.mubr.bf16.mxu0 %v358
      %560 = vmatmul.mubr.bf16.gmra.mxu0 %v357
      %v561 = vpop.f32.mrf.mxu0
      %v562 = vadd.f32 0.0, %v561
      %v563 = vpop.f32.mrf.mxu0
      %v564 = vpop.f32.mrf.mxu0
      %v565 = vadd.f32 0.0, %v564
      %v566 = vpop.f32.mrf.mxu0
      %567 = vdwg.mxu0
      %v568 = vadd.f32 %v227, %v506
      %v569 = vadd.f32 %v228, %v509
      %v570 = vadd.f32 %v229, %v514
      %v571 = vadd.f32 %v230, %v517
      %v572 = vadd.f32 %v231, %v522
      %v573 = vadd.f32 %v232, %v525
      %v574 = vadd.f32 %v233, %v530
      %v575 = vadd.f32 %v234, %v533
      %v576 = vadd.f32 %v235, %v538
      %v577 = vadd.f32 %v236, %v541
      %v578 = vadd.f32 %v237, %v546
      %v579 = vadd.f32 %v238, %v549
      %v580 = vadd.f32 %v239, %v554
      %v581 = vadd.f32 %v240, %v557
      %v582 = vadd.f32 %v241, %v562
      %v583 = vadd.f32 %v242, %v565
      %584 = vst [vmem:[#allocation2] sm:$0xff] %v568
      %585 = vst [vmem:[#allocation2 + $0x8] sm:$0xff] %v569
      %586 = vst [vmem:[#allocation2 + $0x10] sm:$0xff] %v570
      %587 = vst [vmem:[#allocation2 + $0x18] sm:$0xff] %v571
      %588 = vst [vmem:[#allocation2 + $0x20] sm:$0xff] %v572
      %589 = vst [vmem:[#allocation2 + $0x28] sm:$0xff] %v573
      %590 = vst [vmem:[#allocation2 + $0x30] sm:$0xff] %v574
      %591 = vst [vmem:[#allocation2 + $0x38] sm:$0xff] %v575
      %592 = vst [vmem:[#allocation2 + $0x40] sm:$0xff] %v576
      %593 = vst [vmem:[#allocation2 + $0x48] sm:$0xff] %v577
      %594 = vst [vmem:[#allocation2 + $0x50] sm:$0xff] %v578
      %595 = vst [vmem:[#allocation2 + $0x58] sm:$0xff] %v579
      %596 = vst [vmem:[#allocation2 + $0x60] sm:$0xff] %v580
      %597 = vst [vmem:[#allocation2 + $0x68] sm:$0xff] %v581
      %598 = vst [vmem:[#allocation2 + $0x70] sm:$0xff] %v582
      %599 = vst [vmem:[#allocation2 + $0x78] sm:$0xff] %v583
      // Predicated region
      $region37: #{_lambda_.7} parent=31 // pred_check
        %p600 = pneg %p206
      $region38: #{_lambda_.7} parent=31 // pred_check_branch
        %602 = sbr.rel (%p600) target = $region40
      $region39: #{_lambda_.7} parent=31 // pred_region
        %v603 = vld [vmem:[#allocation2] sm:$0xff]
        %v604 = vld [vmem:[#allocation2 + $0x8] sm:$0xff]
        %v605 = vld [vmem:[#allocation2 + $0x10] sm:$0xff]
        %v606 = vld [vmem:[#allocation2 + $0x18] sm:$0xff]
        %v607 = vld [vmem:[#allocation2 + $0x20] sm:$0xff]
        %v608 = vld [vmem:[#allocation2 + $0x28] sm:$0xff]
        %v609 = vld [vmem:[#allocation2 + $0x30] sm:$0xff]
        %v610 = vld [vmem:[#allocation2 + $0x38] sm:$0xff]
        %v611 = vld [vmem:[#allocation2 + $0x40] sm:$0xff]
        %v612 = vld [vmem:[#allocation2 + $0x48] sm:$0xff]
        %v613 = vld [vmem:[#allocation2 + $0x50] sm:$0xff]
        %v614 = vld [vmem:[#allocation2 + $0x58] sm:$0xff]
        %v615 = vld [vmem:[#allocation2 + $0x60] sm:$0xff]
        %v616 = vld [vmem:[#allocation2 + $0x68] sm:$0xff]
        %v617 = vld [vmem:[#allocation2 + $0x70] sm:$0xff]
        %v618 = vld [vmem:[#allocation2 + $0x78] sm:$0xff]
        %v619 = vld [vmem:[%s2] sm:$0x1]
        %v621 = vlaneseq
        %v622 = vshrl.u32 %v621, 7
        %v623 = vsub.s32 0, %v622
        %v624 = vrot.slane %v619, %v623
        %v626 = vadd.f32 %v603, %v624
        %v627 = vadd.f32 %v604, %v624
        %v628 = vadd.f32 %v605, %v624
        %v629 = vadd.f32 %v606, %v624
        %v630 = vadd.f32 %v607, %v624
        %v631 = vadd.f32 %v608, %v624
        %v632 = vadd.f32 %v609, %v624
        %v633 = vadd.f32 %v610, %v624
        %v634 = vadd.f32 %v611, %v624
        %v635 = vadd.f32 %v612, %v624
        %v636 = vadd.f32 %v613, %v624
        %v637 = vadd.f32 %v614, %v624
        %v638 = vadd.f32 %v615, %v624
        %v639 = vadd.f32 %v616, %v624
        %v640 = vadd.f32 %v617, %v624
        %v641 = vadd.f32 %v618, %v624
        %v642 = vmax.f32 %v626, 0.0
        %v643 = vmax.f32 %v627, 0.0
        %v644 = vmax.f32 %v628, 0.0
        %v645 = vmax.f32 %v629, 0.0
        %v646 = vmax.f32 %v630, 0.0
        %v647 = vmax.f32 %v631, 0.0
        %v648 = vmax.f32 %v632, 0.0
        %v649 = vmax.f32 %v633, 0.0
        %v650 = vmax.f32 %v634, 0.0
        %v651 = vmax.f32 %v635, 0.0
        %v652 = vmax.f32 %v636, 0.0
        %v653 = vmax.f32 %v637, 0.0
        %v654 = vmax.f32 %v638, 0.0
        %v655 = vmax.f32 %v639, 0.0
        %v656 = vmax.f32 %v640, 0.0
        %v657 = vmax.f32 %v641, 0.0
        %658 = vst [vmem:[%s203] sm:$0xff] %v642
        %659 = vst [vmem:[%s203 + $0x8] sm:$0xff] %v643
        %660 = vst [vmem:[%s203 + $0x10] sm:$0xff] %v644
        %661 = vst [vmem:[%s203 + $0x18] sm:$0xff] %v645
        %662 = vst [vmem:[%s203 + $0x20] sm:$0xff] %v646
        %663 = vst [vmem:[%s203 + $0x28] sm:$0xff] %v647
        %664 = vst [vmem:[%s203 + $0x30] sm:$0xff] %v648
        %665 = vst [vmem:[%s203 + $0x38] sm:$0xff] %v649
        %666 = vst [vmem:[%s203 + $0x40] sm:$0xff] %v650
        %667 = vst [vmem:[%s203 + $0x48] sm:$0xff] %v651
        %668 = vst [vmem:[%s203 + $0x50] sm:$0xff] %v652
        %669 = vst [vmem:[%s203 + $0x58] sm:$0xff] %v653
        %670 = vst [vmem:[%s203 + $0x60] sm:$0xff] %v654
        %671 = vst [vmem:[%s203 + $0x68] sm:$0xff] %v655
        %672 = vst [vmem:[%s203 + $0x70] sm:$0xff] %v656
        %673 = vst [vmem:[%s203 + $0x78] sm:$0xff] %v657
      $region40: #{_lambda_.7} parent=31 // pred_fallthru
        _
      %s674 = smul.u32 16, %s18
      %p675 = scmp.lt.s32.totalorder %s674, 31
      %s676 = scalar_select %p675, %s674, 31
      %s677 = smul.addr %s676, 8
      %s678 = scalar_lea.vmem %s3, %s677
      // Predicated region
      $region41: #{_lambda_.7} parent=31 // pred_check
        %p679 = pneg %p114
      $region42: #{_lambda_.7} parent=31 // pred_check_branch
        %681 = sbr.rel (%p679) target = $region44
      $region43: #{_lambda_.7} parent=31 // pred_region
        %s682 = smul.u32 16, %s18
      $region44: #{_lambda_.7} parent=31 // pred_fallthru
        _
    $region32: #{_lambda_.7} parent=5 // pred_fallthru
      _
    %p683 = scmp.le.s32.totalorder 2, %s9
    // Predicated region
    $region45: #{_lambda_.7} parent=5 // pred_check
      %p684 = pneg %p683
    $region46: #{_lambda_.7} parent=5 // pred_check_branch
      %686 = sbr.rel (%p684) target = $region48
    $region47: #{_lambda_.7} parent=5 // pred_region
      %s687 = ssub.s32 %s9, 2
      // Predicated region
      $region49: #{_lambda_.7} parent=47 // pred_check
        %p688 = pneg %p120
      $region50: #{_lambda_.7} parent=47 // pred_check_branch
        %690 = sbr.rel (%p688) target = $region52
      $region51: #{_lambda_.7} parent=47 // pred_region
        %s691 = smul.u32 16, %s20
        %p692 = scmp.lt.s32.totalorder %s691, 31
        %s693 = scalar_select %p692, %s691, 31
        %s694 = smul.addr %s693, 8
        %s695 = scalar_lea.vmem %s3, %s694
      $region52: #{_lambda_.7} parent=47 // pred_fallthru
        _
    $region48: #{_lambda_.7} parent=5 // pred_fallthru
      _
  $region6: #{_lambda_.7} parent=0 // loop_footer
    %s13 = sadd.s32 1, %s9
  $region7: #{_lambda_.7} parent=0 // loop_footer_branch
    %8 = sbr.rel target = $region3
  $region8: #{_lambda_.7} parent=0 // loop_exit
    _

// kernel: _lambda_.5
$region0: #{_lambda_.5}
  #allocation0 [shape = 'u32[]', space=smem, size = 0x4, offset = 0x4, fixed_abs, tag = 'smem constant byte address 0x4 - core index']
  #allocation1 [shape = 'u32[144,128]{1,0:T(1,128)}', space=vmem, size = 0x12000, scoped, tag = 'internal scratch']
  #allocation2 [shape = 'f32[128,128]{1,0:T(8,128)}', space=vmem, size = 0x10000, scoped, tag = 'scratch operand']
  %s0 = inlined_call_operand.vmem [shape: bf16[256,256], index: 0, kind: input, shape index: {}]
  %s1 = inlined_call_operand.vmem [shape: bf16[256,128], index: 1, kind: input, shape index: {}]
  %s2 = inlined_call_operand.vmem [shape: f32[1,128], index: 2, kind: input, shape index: {}]
  %s3 = inlined_call_operand.vmem [shape: bf16[256,128], index: 3, kind: output, shape index: {}]
  %s4 = sld [smem:[#allocation0]]
  $region53: #{_lambda_.5} parent=0
    _
  %s6 = ssub.s32 1, %s4
  %s7 = scalar_select 0, %s6, %s4
  loop: start=0, step=1, limit=4
  $region2: #{_lambda_.5} parent=0 // loop_pre_header
    _
  $region3: #{_lambda_.5} parent=0 // loop_header
    %s9 = sphi 0, %s13
    %p10 = scmp.ge.s32.totalorder %s9, 4
    %s16 = sphi 0, %s28
    %s17 = sphi 0, %s24
    %s18 = sphi 0, %s16
    %s19 = sphi 0, %s17
    %s20 = sphi 0, %s18
    %s21 = sphi 0, %s19
    %s33 = sphi 0, %s35
    %s36 = sphi 0, %s33
    %s37 = sphi 0, %s36
    %s53 = sphi 0, %s37
    %s57 = sphi 0, %s57
    %s59 = sphi 0, %s57
    %s60 = sphi 0, %s59
    %s74 = sphi 0, %s60
    %s78 = sphi 0, %s78
    %s80 = sphi 0, %s78
    %s81 = sphi 0, %s80
    %s95 = sphi 0, %s81
    %s101 = sphi 0, %s103
    %s104 = sphi 0, %s101
    %s105 = sphi 0, %s104
    %s121 = sphi 0, %s105
  $region4: #{_lambda_.5} parent=0 // loop_header_branch
    %12 = sbr.rel (%p10) target = $region8
  $region5: #{_lambda_.5} parent=0 // loop_body
    %s14 = ssub.s32 %s9, 1
    %s15 = ssub.s32 %s9, 2
    %s22 = sadd.s32 1, %s17
    %p23 = scmp.ge.s32.totalorder %s22, 1
    %s24 = scalar_select %p23, 0, %s22
    %s25 = sadd.s32 1, %s16
    %s26 = scalar_select %p23, %s25, %s16
    %p27 = scmp.ge.s32.totalorder %s26, 2
    %s28 = scalar_select %p27, 0, %s26
    %s29 = ssub.s32 %s16, %s28
    %s30 = ssub.s32 %s17, %s24
    %s31 = sor.u32 %s29, %s30
    %p32 = scmp.eq.s32.totalorder %s31, 0
    %s34 = sadd.s32 %s33, 1
    %s35 = scalar_select %p32, %s33, %s34
    %p38 = pneg %p32
    %p39 = scmp.eq.s32.totalorder %s9, 1
    %p40 = por %p38, %p39
    %p41 = scmp.ne.s32.totalorder %s33, %s36
    %p42 = scmp.eq.s32.totalorder %s9, 0
    %p43 = por %p41, %p42
    %p44 = scmp.ne.s32.totalorder %s33, %s36
    %p45 = scmp.eq.s32.totalorder %s14, 1
    %p46 = por %p44, %p45
    %p47 = scmp.ne.s32.totalorder %s36, %s37
    %p48 = scmp.eq.s32.totalorder %s14, 0
    %p49 = por %p47, %p48
    %p50 = scmp.ne.s32.totalorder %s36, %s37
    %p51 = scmp.eq.s32.totalorder %s15, 1
    %p52 = por %p50, %p51
    %p54 = scmp.ne.s32.totalorder %s37, %s53
    %p55 = scmp.eq.s32.totalorder %s15, 0
    %p56 = por %p54, %p55
    %s58 = sadd.s32 %s57, 1
    %p61 = scmp.eq.s32.totalorder %s9, 1
    %p62 = scmp.ne.s32.totalorder %s57, %s59
    %p63 = scmp.eq.s32.totalorder %s9, 0
    %p64 = por %p62, %p63
    %p65 = scmp.ne.s32.totalorder %s57, %s59
    %p66 = scmp.eq.s32.totalorder %s14, 1
    %p67 = por %p65, %p66
    %p68 = scmp.ne.s32.totalorder %s59, %s60
    %p69 = scmp.eq.s32.totalorder %s14, 0
    %p70 = por %p68, %p69
    %p71 = scmp.ne.s32.totalorder %s59, %s60
    %p72 = scmp.eq.s32.totalorder %s15, 1
    %p73 = por %p71, %p72
    %p75 = scmp.ne.s32.totalorder %s60, %s74
    %p76 = scmp.eq.s32.totalorder %s15, 0
    %p77 = por %p75, %p76
    %s79 = sadd.s32 %s78, 1
    %p82 = scmp.eq.s32.totalorder %s9, 1
    %p83 = scmp.ne.s32.totalorder %s78, %s80
    %p84 = scmp.eq.s32.totalorder %s9, 0
    %p85 = por %p83, %p84
    %p86 = scmp.ne.s32.totalorder %s78, %s80
    %p87 = scmp.eq.s32.totalorder %s14, 1
    %p88 = por %p86, %p87
    %p89 = scmp.ne.s32.totalorder %s80, %s81
    %p90 = scmp.eq.s32.totalorder %s14, 0
    %p91 = por %p89, %p90
    %p92 = scmp.ne.s32.totalorder %s80, %s81
    %p93 = scmp.eq.s32.totalorder %s15, 1
    %p94 = por %p92, %p93
    %p96 = scmp.ne.s32.totalorder %s81, %s95
    %p97 = scmp.eq.s32.totalorder %s15, 0
    %p98 = por %p96, %p97
    %s99 = ssub.s32 %s16, %s28
    %p100 = scmp.eq.s32.totalorder %s99, 0
    %s102 = sadd.s32 %s101, 1
    %s103 = scalar_select %p100, %s101, %s102
    %p106 = pneg %p100
    %p107 = scmp.eq.s32.totalorder %s9, 1
    %p108 = por %p106, %p107
    %p109 = scmp.ne.s32.totalorder %s101, %s104
    %p110 = scmp.eq.s32.totalorder %s9, 0
    %p111 = por %p109, %p110
    %p112 = scmp.ne.s32.totalorder %s101, %s104
    %p113 = scmp.eq.s32.totalorder %s14, 1
    %p114 = por %p112, %p113
    %p115 = scmp.ne.s32.totalorder %s104, %s105
    %p116 = scmp.eq.s32.totalorder %s14, 0
    %p117 = por %p115, %p116
    %p118 = scmp.ne.s32.totalorder %s104, %s105
    %p119 = scmp.eq.s32.totalorder %s15, 1
    %p120 = por %p118, %p119
    %p122 = scmp.ne.s32.totalorder %s105, %s121
    %p123 = scmp.eq.s32.totalorder %s15, 0
    %p124 = por %p122, %p123
    %p125 = scmp.le.s32.totalorder 1, %s9
    %p126 = scmp.lt.s32.totalorder %s9, 3
    %p127 = pnand %p125, %p126
    %p128 = pneg %p127
    // Predicated region
    $region9: #{_lambda_.5} parent=5 // pred_check
      _
    $region10: #{_lambda_.5} parent=5 // pred_check_branch
      %130 = sbr.rel (%p127) target = $region12
    $region11: #{_lambda_.5} parent=5 // pred_region
      %s131 = ssub.s32 %s9, 1
      // Predicated region
      $region13: #{_lambda_.5} parent=11 // pred_check
        %p132 = pneg %p70
      $region14: #{_lambda_.5} parent=11 // pred_check_branch
        %134 = sbr.rel (%p132) target = $region16
      $region15: #{_lambda_.5} parent=11 // pred_region
        _
      $region16: #{_lambda_.5} parent=11 // pred_fallthru
        _
      // Predicated region
      $region17: #{_lambda_.5} parent=11 // pred_check
        %p135 = pneg %p91
      $region18: #{_lambda_.5} parent=11 // pred_check_branch
        %137 = sbr.rel (%p135) target = $region20
      $region19: #{_lambda_.5} parent=11 // pred_region
        _
      $region20: #{_lambda_.5} parent=11 // pred_fallthru
        _
    $region12: #{_lambda_.5} parent=5 // pred_fallthru
      _
    %p138 = scmp.lt.s32.totalorder %s9, 2
    // Predicated region
    $region21: #{_lambda_.5} parent=5 // pred_check
      %p139 = pneg %p138
    $region22: #{_lambda_.5} parent=5 // pred_check_branch
      %141 = sbr.rel (%p139) target = $region24
    $region23: #{_lambda_.5} parent=5 // pred_region
      // Predicated region
      $region25: #{_lambda_.5} parent=23 // pred_check
        %p142 = pneg %p43
      $region26: #{_lambda_.5} parent=23 // pred_check_branch
        %144 = sbr.rel (%p142) target = $region28
      $region27: #{_lambda_.5} parent=23 // pred_region
        %s145 = smul.u32 16, %s16
        %s146 = smul.u32 2, %s17
        %p147 = scmp.lt.s32.totalorder %s145, 31
        %s148 = scalar_select %p147, %s145, 31
        %p149 = scmp.lt.s32.totalorder %s146, 1
        %s150 = scalar_select %p149, %s146, 1
        %s151 = smul.addr %s148, 2
        %s152 = sadd.s32 %s150, %s151
        %s153 = smul.addr %s152, 4
        %s154 = scalar_lea.vmem %s0, %s153
        %s155 = smul.u32 16, %s16
        %s156 = smul.u32 2, %s17
      $region28: #{_lambda_.5} parent=23 // pred_fallthru
        _
    $region24: #{_lambda_.5} parent=5 // pred_fallthru
      _
    %p157 = scmp.le.s32.totalorder 1, %s9
    %p158 = scmp.lt.s32.totalorder %s9, 3
    %p159 = pnand %p157, %p158
    %p160 = pneg %p159
    // Predicated region
    $region29: #{_lambda_.5} parent=5 // pred_check
      _
    $region30: #{_lambda_.5} parent=5 // pred_check_branch
      %162 = sbr.rel (%p159) target = $region32
    $region31: #{_lambda_.5} parent=5 // pred_region
      %s163 = ssub.s32 %s9, 1
      %s164 = smul.u32 16, %s18
      %s165 = smul.u32 2, %s19
      %p166 = scmp.lt.s32.totalorder %s164, 31
      %s167 = scalar_select %p166, %s164, 31
      %p168 = scmp.lt.s32.totalorder %s165, 1
      %s169 = scalar_select %p168, %s165, 1
      %s170 = smul.addr %s167, 2
      %s171 = sadd.s32 %s169, %s170
      %s172 = smul.addr %s171, 4
      %s173 = scalar_lea.vmem %s0, %s172
      %p174 = pneg %p49
      %p175 = pneg %p46
      %p176 = pneg %p70
      %p177 = pneg %p67
      %p178 = pneg %p91
      %p179 = pneg %p88
      %p180 = pneg %p117
      %p181 = pneg %p114
      %s182 = smul.u32 16, %s18
      %p183 = scmp.lt.s32.totalorder %s182, 31
      %s184 = scalar_select %p183, %s182, 31
      %s185 = smul.addr %s184, 4
      %s186 = scalar_lea.vmem %s3, %s185
      %s187 = smul.u32 16, %s18
      %s188 = smul.u32 2, %s19
      %p189 = scmp.lt.s32.totalorder %s187, 31
      %s190 = scalar_select %p189, %s187, 31
      %p191 = scmp.lt.s32.totalorder %s188, 1
      %s192 = scalar_select %p191, %s188, 1
      %s193 = smul.addr %s190, 2
      %s194 = sadd.s32 %s192, %s193
      %s195 = smul.addr %s194, 4
      %s196 = scalar_lea.vmem %s0, %s195
      %s197 = smul.u32 16, %s18
      %s198 = smul.u32 2, %s19
      %s199 = smul.u32 16, %s18
      %p200 = scmp.lt.s32.totalorder %s199, 31
      %s201 = scalar_select %p200, %s199, 31
      %s202 = smul.addr %s201, 4
      %s203 = scalar_lea.vmem %s3, %s202
      %s204 = smul.u32 16, %s18
      %p206 = scmp.eq.s32.totalorder %s19, 0
      // Predicated region
      $region33: #{_lambda_.5} parent=31 // pred_check
        %p207 = pneg %p206
      $region34: #{_lambda_.5} parent=31 // pred_check_branch
        %209 = sbr.rel (%p207) target = $region36
      $region35: #{_lambda_.5} parent=31 // pred_region
        %210 = vst [vmem:[#allocation2] sm:$0xff] 0.0
        %211 = vst [vmem:[#allocation2 + $0x8] sm:$0xff] 0.0
        %212 = vst [vmem:[#allocation2 + $0x10] sm:$0xff] 0.0
        %213 = vst [vmem:[#allocation2 + $0x18] sm:$0xff] 0.0
        %214 = vst [vmem:[#allocation2 + $0x20] sm:$0xff] 0.0
        %215 = vst [vmem:[#allocation2 + $0x28] sm:$0xff] 0.0
        %216 = vst [vmem:[#allocation2 + $0x30] sm:$0xff] 0.0
        %217 = vst [vmem:[#allocation2 + $0x38] sm:$0xff] 0.0
        %218 = vst [vmem:[#allocation2 + $0x40] sm:$0xff] 0.0
        %219 = vst [vmem:[#allocation2 + $0x48] sm:$0xff] 0.0
        %220 = vst [vmem:[#allocation2 + $0x50] sm:$0xff] 0.0
        %221 = vst [vmem:[#allocation2 + $0x58] sm:$0xff] 0.0
        %222 = vst [vmem:[#allocation2 + $0x60] sm:$0xff] 0.0
        %223 = vst [vmem:[#allocation2 + $0x68] sm:$0xff] 0.0
        %224 = vst [vmem:[#allocation2 + $0x70] sm:$0xff] 0.0
        %225 = vst [vmem:[#allocation2 + $0x78] sm:$0xff] 0.0
      $region36: #{_lambda_.5} parent=31 // pred_fallthru
        _
      %s226 = smul.u32 %s19, 256
      %v227 = vld [vmem:[#allocation2] sm:$0xff]
      %v228 = vld [vmem:[#allocation2 + $0x8] sm:$0xff]
      %v229 = vld [vmem:[#allocation2 + $0x10] sm:$0xff]
      %v230 = vld [vmem:[#allocation2 + $0x18] sm:$0xff]
      %v231 = vld [vmem:[#allocation2 + $0x20] sm:$0xff]
      %v232 = vld [vmem:[#allocation2 + $0x28] sm:$0xff]
      %v233 = vld [vmem:[#allocation2 + $0x30] sm:$0xff]
      %v234 = vld [vmem:[#allocation2 + $0x38] sm:$0xff]
      %v235 = vld [vmem:[#allocation2 + $0x40] sm:$0xff]
      %v236 = vld [vmem:[#allocation2 + $0x48] sm:$0xff]
      %v237 = vld [vmem:[#allocation2 + $0x50] sm:$0xff]
      %v238 = vld [vmem:[#allocation2 + $0x58] sm:$0xff]
      %v239 = vld [vmem:[#allocation2 + $0x60] sm:$0xff]
      %v240 = vld [vmem:[#allocation2 + $0x68] sm:$0xff]
      %v241 = vld [vmem:[#allocation2 + $0x70] sm:$0xff]
      %v242 = vld [vmem:[#allocation2 + $0x78] sm:$0xff]
      %v243 = vld [vmem:[%s196] sm:$0xff]
      %v244 = vld [vmem:[%s196 + $0x8] sm:$0xff]
      %v245 = vld [vmem:[%s196 + $0x10] sm:$0xff]
      %v246 = vld [vmem:[%s196 + $0x18] sm:$0xff]
      %v247 = vld [vmem:[%s196 + $0x20] sm:$0xff]
      %v248 = vld [vmem:[%s196 + $0x28] sm:$0xff]
      %v249 = vld [vmem:[%s196 + $0x30] sm:$0xff]
      %v250 = vld [vmem:[%s196 + $0x38] sm:$0xff]
      %v251 = vld [vmem:[%s196 + $0x40] sm:$0xff]
      %v252 = vld [vmem:[%s196 + $0x48] sm:$0xff]
      %v253 = vld [vmem:[%s196 + $0x50] sm:$0xff]
      %v254 = vld [vmem:[%s196 + $0x58] sm:$0xff]
      %v255 = vld [vmem:[%s196 + $0x60] sm:$0xff]
      %v256 = vld [vmem:[%s196 + $0x68] sm:$0xff]
      %v257 = vld [vmem:[%s196 + $0x70] sm:$0xff]
      %v258 = vld [vmem:[%s196 + $0x78] sm:$0xff]
      %s259 = sshra.s32 %s226, 3
      %s260 = sand.u32 %s226, 7
      %s261 = smul.addr %s259, 4
      %s262 = scalar_lea.vmem %s1, %s261
      %v263 = vld [vmem:[%s262] sm:$0xf]
      %v264 = vld [vmem:[%s262 + $0x4] sm:$0xf]
      %v265 = vld [vmem:[%s262 + $0x8] sm:$0xf]
      %v266 = vld [vmem:[%s262 + $0xc] sm:$0xf]
      %v267 = vld [vmem:[%s262 + $0x10] sm:$0xf]
      %v268 = vld [vmem:[%s262 + $0x14] sm:$0xf]
      %v269 = vld [vmem:[%s262 + $0x18] sm:$0xf]
      %v270 = vld [vmem:[%s262 + $0x1c] sm:$0xf]
      %v271 = vld [vmem:[%s262 + $0x20] sm:$0xf]
      %v272 = vld [vmem:[%s262 + $0x24] sm:$0xf]
      %v273 = vld [vmem:[%s262 + $0x28] sm:$0xf]
      %v274 = vld [vmem:[%s262 + $0x2c] sm:$0xf]
      %v275 = vld [vmem:[%s262 + $0x30] sm:$0xf]
      %v276 = vld [vmem:[%s262 + $0x34] sm:$0xf]
      %v277 = vld [vmem:[%s262 + $0x38] sm:$0xf]
      %v278 = vld [vmem:[%s262 + $0x3c] sm:$0xf]
      %v279 = vld [vmem:[%s262 + $0x40] sm:$0xf]
      %v280 = vld [vmem:[%s262 + $0x44] sm:$0xf]
      %v281 = vld [vmem:[%s262 + $0x48] sm:$0xf]
      %v282 = vld [vmem:[%s262 + $0x4c] sm:$0xf]
      %v283 = vld [vmem:[%s262 + $0x50] sm:$0xf]
      %v284 = vld [vmem:[%s262 + $0x54] sm:$0xf]
      %v285 = vld [vmem:[%s262 + $0x58] sm:$0xf]
      %v286 = vld [vmem:[%s262 + $0x5c] sm:$0xf]
      %v287 = vld [vmem:[%s262 + $0x60] sm:$0xf]
      %v288 = vld [vmem:[%s262 + $0x64] sm:$0xf]
      %v289 = vld [vmem:[%s262 + $0x68] sm:$0xf]
      %v290 = vld [vmem:[%s262 + $0x6c] sm:$0xf]
      %v291 = vld [vmem:[%s262 + $0x70] sm:$0xf]
      %v292 = vld [vmem:[%s262 + $0x74] sm:$0xf]
      %v293 = vld [vmem:[%s262 + $0x78] sm:$0xf]
      %v294 = vld [vmem:[%s262 + $0x7c] sm:$0xf]
      %v311 = vunpack.c.l.b16 %v243
      %v312 = vunpack.c.h.b16 %v243
      %v313 = vunpack.c.l.b16 %v244
      %v314 = vunpack.c.h.b16 %v244
      %v315 = vunpack.c.l.b16 %v245
      %v316 = vunpack.c.h.b16 %v245
      %v317 = vunpack.c.l.b16 %v246
      %v318 = vunpack.c.h.b16 %v246
      %v319 = vunpack.c.l.b16 %v247
      %v320 = vunpack.c.h.b16 %v247
      %v321 = vunpack.c.l.b16 %v248
      %v322 = vunpack.c.h.b16 %v248
      %v323 = vunpack.c.l.b16 %v249
      %v324 = vunpack.c.h.b16 %v249
      %v325 = vunpack.c.l.b16 %v250
      %v326 = vunpack.c.h.b16 %v250
      %v327 = vunpack.c.l.b16 %v251
      %v328 = vunpack.c.h.b16 %v251
      %v329 = vunpack.c.l.b16 %v252
      %v330 = vunpack.c.h.b16 %v252
      %v331 = vunpack.c.l.b16 %v253
      %v332 = vunpack.c.h.b16 %v253
      %v333 = vunpack.c.l.b16 %v254
      %v334 = vunpack.c.h.b16 %v254
      %v335 = vunpack.c.l.b16 %v255
      %v336 = vunpack.c.h.b16 %v255
      %v337 = vunpack.c.l.b16 %v256
      %v338 = vunpack.c.h.b16 %v256
      %v339 = vunpack.c.l.b16 %v257
      %v340 = vunpack.c.h.b16 %v257
      %v341 = vunpack.c.l.b16 %v258
      %v342 = vunpack.c.h.b16 %v258
      %v343 = vpack.c.b16 %v313, %v311
      %v344 = vpack.c.b16 %v314, %v312
      %v345 = vpack.c.b16 %v317, %v315
      %v346 = vpack.c.b16 %v318, %v316
      %v347 = vpack.c.b16 %v321, %v319
      %v348 = vpack.c.b16 %v322, %v320
      %v349 = vpack.c.b16 %v325, %v323
      %v350 = vpack.c.b16 %v326, %v324
      %v351 = vpack.c.b16 %v329, %v327
      %v352 = vpack.c.b16 %v330, %v328
      %v353 = vpack.c.b16 %v333, %v331
      %v354 = vpack.c.b16 %v334, %v332
      %v355 = vpack.c.b16 %v337, %v335
      %v356 = vpack.c.b16 %v338, %v336
      %v357 = vpack.c.b16 %v341, %v339
      %v358 = vpack.c.b16 %v342, %v340
      %v407 = vunpack.c.l.b16 %v263
      %v408 = vunpack.c.l.b16 %v264
      %v409 = vunpack.c.l.b16 %v265
      %v410 = vunpack.c.l.b16 %v266
      %v411 = vunpack.c.l.b16 %v267
      %v412 = vunpack.c.l.b16 %v268
      %v413 = vunpack.c.l.b16 %v269
      %v414 = vunpack.c.l.b16 %v270
      %v415 = vunpack.c.l.b16 %v271
      %v416 = vunpack.c.l.b16 %v272
      %v417 = vunpack.c.l.b16 %v273
      %v418 = vunpack.c.l.b16 %v274
      %v419 = vunpack.c.l.b16 %v275
      %v420 = vunpack.c.l.b16 %v276
      %v421 = vunpack.c.l.b16 %v277
      %v422 = vunpack.c.l.b16 %v278
      %v423 = vunpack.c.l.b16 %v279
      %v424 = vunpack.c.l.b16 %v280
      %v425 = vunpack.c.l.b16 %v281
      %v426 = vunpack.c.l.b16 %v282
      %v427 = vunpack.c.l.b16 %v283
      %v428 = vunpack.c.l.b16 %v284
      %v429 = vunpack.c.l.b16 %v285
      %v430 = vunpack.c.l.b16 %v286
      %v431 = vunpack.c.l.b16 %v287
      %v432 = vunpack.c.l.b16 %v288
      %v433 = vunpack.c.l.b16 %v289
      %v434 = vunpack.c.l.b16 %v290
      %v435 = vunpack.c.l.b16 %v291
      %v436 = vunpack.c.l.b16 %v292
      %v437 = vunpack.c.l.b16 %v293
      %v438 = vunpack.c.l.b16 %v294
      %v439 = vpack.c.b16 %v408, %v407
      %v440 = vpack.c.b16 %v410, %v409
      %v441 = vpack.c.b16 %v412, %v411
      %v442 = vpack.c.b16 %v414, %v413
      %v443 = vpack.c.b16 %v416, %v415
      %v444 = vpack.c.b16 %v418, %v417
      %v445 = vpack.c.b16 %v420, %v419
      %v446 = vpack.c.b16 %v422, %v421
      %v447 = vpack.c.b16 %v424, %v423
      %v448 = vpack.c.b16 %v426, %v425
      %v449 = vpack.c.b16 %v428, %v427
      %v450 = vpack.c.b16 %v430, %v429
      %v451 = vpack.c.b16 %v432, %v431
      %v452 = vpack.c.b16 %v434, %v433
      %v453 = vpack.c.b16 %v436, %v435
      %v454 = vpack.c.b16 %v438, %v437
      %471 = vmatprep.subr.bf16.mxu0 0
      %472 = vmatpush1.bf16.msra.mxu0 %v446
      %473 = vmatprep.subr.bf16.mxu0 0
      %474 = vmatpush1.bf16.msra.mxu0 %v445
      %475 = vmatprep.subr.bf16.mxu0 0
      %476 = vmatpush1.bf16.msra.mxu0 %v444
      %477 = vmatprep.subr.bf16.mxu0 0
      %478 = vmatpush1.bf16.msra.mxu0 %v443
      %479 = vmatprep.subr.bf16.mxu0 0
      %480 = vmatpush1.bf16.msra.mxu0 %v442
      %481 = vmatprep.subr.bf16.mxu0 0
      %482 = vmatpush1.bf16.msra.mxu0 %v441
      %483 = vmatprep.subr.bf16.mxu0 0
      %484 = vmatpush1.bf16.msra.mxu0 %v440
      %485 = vmatprep.subr.bf16.mxu0 0
      %486 = vmatpush1.bf16.msra.mxu0 %v439
      %487 = vmatprep.subr.bf16.mxu0 0
      %488 = vmatpush2.bf16.msra.mxu0 %v454
      %489 = vmatprep.subr.bf16.mxu0 0
      %490 = vmatpush2.bf16.msra.mxu0 %v453
      %491 = vmatprep.subr.bf16.mxu0 0
      %492 = vmatpush2.bf16.msra.mxu0 %v452
      %493 = vmatprep.subr.bf16.mxu0 0
      %494 = vmatpush2.bf16.msra.mxu0 %v451
      %495 = vmatprep.subr.bf16.mxu0 0
      %496 = vmatpush2.bf16.msra.mxu0 %v450
      %497 = vmatprep.subr.bf16.mxu0 0
      %498 = vmatpush2.bf16.msra.mxu0 %v449
      %499 = vmatprep.subr.bf16.mxu0 0
      %500 = vmatpush2.bf16.msra.mxu0 %v448
      %501 = vmatprep.subr.bf16.mxu0 0
      %502 = vmatpush2.bf16.msra.mxu0 %v447
      %503 = vmatprep.mubr.bf16.mxu0 %v344
      %504 = vmatmul.mubr.bf16.gmra.mxu0 %v343
      %v505 = vpop.f32.mrf.mxu0
      %v506 = vadd.f32 0.0, %v505
      %v507 = vpop.f32.mrf.mxu0
      %v508 = vpop.f32.mrf.mxu0
      %v509 = vadd.f32 0.0, %v508
      %v510 = vpop.f32.mrf.mxu0
      %511 = vmatprep.mubr.bf16.mxu0 %v346
      %512 = vmatmul.mubr.bf16.gmra.mxu0 %v345
      %v513 = vpop.f32.mrf.mxu0
      %v514 = vadd.f32 0.0, %v513
      %v515 = vpop.f32.mrf.mxu0
      %v516 = vpop.f32.mrf.mxu0
      %v517 = vadd.f32 0.0, %v516
      %v518 = vpop.f32.mrf.mxu0
      %519 = vmatprep.mubr.bf16.mxu0 %v348
      %520 = vmatmul.mubr.bf16.gmra.mxu0 %v347
      %v521 = vpop.f32.mrf.mxu0
      %v522 = vadd.f32 0.0, %v521
      %v523 = vpop.f32.mrf.mxu0
      %v524 = vpop.f32.mrf.mxu0
      %v525 = vadd.f32 0.0, %v524
      %v526 = vpop.f32.mrf.mxu0
      %527 = vmatprep.mubr.bf16.mxu0 %v350
      %528 = vmatmul.mubr.bf16.gmra.mxu0 %v349
      %v529 = vpop.f32.mrf.mxu0
      %v530 = vadd.f32 0.0, %v529
      %v531 = vpop.f32.mrf.mxu0
      %v532 = vpop.f32.mrf.mxu0
      %v533 = vadd.f32 0.0, %v532
      %v534 = vpop.f32.mrf.mxu0
      %535 = vmatprep.mubr.bf16.mxu0 %v352
      %536 = vmatmul.mubr.bf16.gmra.mxu0 %v351
      %v537 = vpop.f32.mrf.mxu0
      %v538 = vadd.f32 0.0, %v537
      %v539 = vpop.f32.mrf.mxu0
      %v540 = vpop.f32.mrf.mxu0
      %v541 = vadd.f32 0.0, %v540
      %v542 = vpop.f32.mrf.mxu0
      %543 = vmatprep.mubr.bf16.mxu0 %v354
      %544 = vmatmul.mubr.bf16.gmra.mxu0 %v353
      %v545 = vpop.f32.mrf.mxu0
      %v546 = vadd.f32 0.0, %v545
      %v547 = vpop.f32.mrf.mxu0
      %v548 = vpop.f32.mrf.mxu0
      %v549 = vadd.f32 0.0, %v548
      %v550 = vpop.f32.mrf.mxu0
      %551 = vmatprep.mubr.bf16.mxu0 %v356
      %552 = vmatmul.mubr.bf16.gmra.mxu0 %v355
      %v553 = vpop.f32.mrf.mxu0
      %v554 = vadd.f32 0.0, %v553
      %v555 = vpop.f32.mrf.mxu0
      %v556 = vpop.f32.mrf.mxu0
      %v557 = vadd.f32 0.0, %v556
      %v558 = vpop.f32.mrf.mxu0
      %559 = vmatprep.mubr.bf16.mxu0 %v358
      %560 = vmatmul.mubr.bf16.gmra.mxu0 %v357
      %v561 = vpop.f32.mrf.mxu0
      %v562 = vadd.f32 0.0, %v561
      %v563 = vpop.f32.mrf.mxu0
      %v564 = vpop.f32.mrf.mxu0
      %v565 = vadd.f32 0.0, %v564
      %v566 = vpop.f32.mrf.mxu0
      %567 = vdwg.mxu0
      %v568 = vadd.f32 %v227, %v506
      %v569 = vadd.f32 %v228, %v509
      %v570 = vadd.f32 %v229, %v514
      %v571 = vadd.f32 %v230, %v517
      %v572 = vadd.f32 %v231, %v522
      %v573 = vadd.f32 %v232, %v525
      %v574 = vadd.f32 %v233, %v530
      %v575 = vadd.f32 %v234, %v533
      %v576 = vadd.f32 %v235, %v538
      %v577 = vadd.f32 %v236, %v541
      %v578 = vadd.f32 %v237, %v546
      %v579 = vadd.f32 %v238, %v549
      %v580 = vadd.f32 %v239, %v554
      %v581 = vadd.f32 %v240, %v557
      %v582 = vadd.f32 %v241, %v562
      %v583 = vadd.f32 %v242, %v565
      %584 = vst [vmem:[#allocation2] sm:$0xff] %v568
      %585 = vst [vmem:[#allocation2 + $0x8] sm:$0xff] %v569
      %586 = vst [vmem:[#allocation2 + $0x10] sm:$0xff] %v570
      %587 = vst [vmem:[#allocation2 + $0x18] sm:$0xff] %v571
      %588 = vst [vmem:[#allocation2 + $0x20] sm:$0xff] %v572
      %589 = vst [vmem:[#allocation2 + $0x28] sm:$0xff] %v573
      %590 = vst [vmem:[#allocation2 + $0x30] sm:$0xff] %v574
      %591 = vst [vmem:[#allocation2 + $0x38] sm:$0xff] %v575
      %592 = vst [vmem:[#allocation2 + $0x40] sm:$0xff] %v576
      %593 = vst [vmem:[#allocation2 + $0x48] sm:$0xff] %v577
      %594 = vst [vmem:[#allocation2 + $0x50] sm:$0xff] %v578
      %595 = vst [vmem:[#allocation2 + $0x58] sm:$0xff] %v579
      %596 = vst [vmem:[#allocation2 + $0x60] sm:$0xff] %v580
      %597 = vst [vmem:[#allocation2 + $0x68] sm:$0xff] %v581
      %598 = vst [vmem:[#allocation2 + $0x70] sm:$0xff] %v582
      %599 = vst [vmem:[#allocation2 + $0x78] sm:$0xff] %v583
      // Predicated region
      $region37: #{_lambda_.5} parent=31 // pred_check
        %p600 = pneg %p206
      $region38: #{_lambda_.5} parent=31 // pred_check_branch
        %602 = sbr.rel (%p600) target = $region40
      $region39: #{_lambda_.5} parent=31 // pred_region
        %v603 = vld [vmem:[#allocation2] sm:$0xff]
        %v604 = vld [vmem:[#allocation2 + $0x8] sm:$0xff]
        %v605 = vld [vmem:[#allocation2 + $0x10] sm:$0xff]
        %v606 = vld [vmem:[#allocation2 + $0x18] sm:$0xff]
        %v607 = vld [vmem:[#allocation2 + $0x20] sm:$0xff]
        %v608 = vld [vmem:[#allocation2 + $0x28] sm:$0xff]
        %v609 = vld [vmem:[#allocation2 + $0x30] sm:$0xff]
        %v610 = vld [vmem:[#allocation2 + $0x38] sm:$0xff]
        %v611 = vld [vmem:[#allocation2 + $0x40] sm:$0xff]
        %v612 = vld [vmem:[#allocation2 + $0x48] sm:$0xff]
        %v613 = vld [vmem:[#allocation2 + $0x50] sm:$0xff]
        %v614 = vld [vmem:[#allocation2 + $0x58] sm:$0xff]
        %v615 = vld [vmem:[#allocation2 + $0x60] sm:$0xff]
        %v616 = vld [vmem:[#allocation2 + $0x68] sm:$0xff]
        %v617 = vld [vmem:[#allocation2 + $0x70] sm:$0xff]
        %v618 = vld [vmem:[#allocation2 + $0x78] sm:$0xff]
        %v619 = vld [vmem:[%s2] sm:$0x1]
        %v621 = vlaneseq
        %v622 = vshrl.u32 %v621, 7
        %v623 = vsub.s32 0, %v622
        %v624 = vrot.slane %v619, %v623
        %v626 = vadd.f32 %v603, %v624
        %v627 = vadd.f32 %v604, %v624
        %v628 = vadd.f32 %v605, %v624
        %v629 = vadd.f32 %v606, %v624
        %v630 = vadd.f32 %v607, %v624
        %v631 = vadd.f32 %v608, %v624
        %v632 = vadd.f32 %v609, %v624
        %v633 = vadd.f32 %v610, %v624
        %v634 = vadd.f32 %v611, %v624
        %v635 = vadd.f32 %v612, %v624
        %v636 = vadd.f32 %v613, %v624
        %v637 = vadd.f32 %v614, %v624
        %v638 = vadd.f32 %v615, %v624
        %v639 = vadd.f32 %v616, %v624
        %v640 = vadd.f32 %v617, %v624
        %v641 = vadd.f32 %v618, %v624
        %v642 = vmax.f32 %v626, 0.0
        %v643 = vmax.f32 %v627, 0.0
        %v644 = vmax.f32 %v628, 0.0
        %v645 = vmax.f32 %v629, 0.0
        %v646 = vmax.f32 %v630, 0.0
        %v647 = vmax.f32 %v631, 0.0
        %v648 = vmax.f32 %v632, 0.0
        %v649 = vmax.f32 %v633, 0.0
        %v650 = vmax.f32 %v634, 0.0
        %v651 = vmax.f32 %v635, 0.0
        %v652 = vmax.f32 %v636, 0.0
        %v653 = vmax.f32 %v637, 0.0
        %v654 = vmax.f32 %v638, 0.0
        %v655 = vmax.f32 %v639, 0.0
        %v656 = vmax.f32 %v640, 0.0
        %v657 = vmax.f32 %v641, 0.0
        %v658 = vpack.c.bf16 %v643, %v642
        %v659 = vpack.c.bf16 %v645, %v644
        %v660 = vpack.c.bf16 %v647, %v646
        %v661 = vpack.c.bf16 %v649, %v648
        %v662 = vpack.c.bf16 %v651, %v650
        %v663 = vpack.c.bf16 %v653, %v652
        %v664 = vpack.c.bf16 %v655, %v654
        %v665 = vpack.c.bf16 %v657, %v656
        %v674 = vunpack.c.l.b16 %v658
        %v675 = vunpack.c.h.b16 %v658
        %v676 = vunpack.c.l.b16 %v659
        %v677 = vunpack.c.h.b16 %v659
        %v678 = vunpack.c.l.b16 %v660
        %v679 = vunpack.c.h.b16 %v660
        %v680 = vunpack.c.l.b16 %v661
        %v681 = vunpack.c.h.b16 %v661
        %v682 = vunpack.c.l.b16 %v662
        %v683 = vunpack.c.h.b16 %v662
        %v684 = vunpack.c.l.b16 %v663
        %v685 = vunpack.c.h.b16 %v663
        %v686 = vunpack.c.l.b16 %v664
        %v687 = vunpack.c.h.b16 %v664
        %v688 = vunpack.c.l.b16 %v665
        %v689 = vunpack.c.h.b16 %v665
        %v690 = vpack.c.b16 %v674, %v674
        %v691 = vpack.c.b16 %v675, %v675
        %v692 = vpack.c.b16 %v676, %v676
        %v693 = vpack.c.b16 %v677, %v677
        %v694 = vpack.c.b16 %v678, %v678
        %v695 = vpack.c.b16 %v679, %v679
        %v696 = vpack.c.b16 %v680, %v680
        %v697 = vpack.c.b16 %v681, %v681
        %v698 = vpack.c.b16 %v682, %v682
        %v699 = vpack.c.b16 %v683, %v683
        %v700 = vpack.c.b16 %v684, %v684
        %v701 = vpack.c.b16 %v685, %v685
        %v702 = vpack.c.b16 %v686, %v686
        %v703 = vpack.c.b16 %v687, %v687
        %v704 = vpack.c.b16 %v688, %v688
        %v705 = vpack.c.b16 %v689, %v689
        %722 = vst [vmem:[%s203] sm:$0xf] %v690
        %723 = vst [vmem:[%s203 + $0x4] sm:$0xf] %v691
        %724 = vst [vmem:[%s203 + $0x8] sm:$0xf] %v692
        %725 = vst [vmem:[%s203 + $0xc] sm:$0xf] %v693
        %726 = vst [vmem:[%s203 + $0x10] sm:$0xf] %v694
        %727 = vst [vmem:[%s203 + $0x14] sm:$0xf] %v695
        %728 = vst [vmem:[%s203 + $0x18] sm:$0xf] %v696
        %729 = vst [vmem:[%s203 + $0x1c] sm:$0xf] %v697
        %730 = vst [vmem:[%s203 + $0x20] sm:$0xf] %v698
        %731 = vst [vmem:[%s203 + $0x24] sm:$0xf] %v699
        %732 = vst [vmem:[%s203 + $0x28] sm:$0xf] %v700
        %733 = vst [vmem:[%s203 + $0x2c] sm:$0xf] %v701
        %734 = vst [vmem:[%s203 + $0x30] sm:$0xf] %v702
        %735 = vst [vmem:[%s203 + $0x34] sm:$0xf] %v703
        %736 = vst [vmem:[%s203 + $0x38] sm:$0xf] %v704
        %737 = vst [vmem:[%s203 + $0x3c] sm:$0xf] %v705
      $region40: #{_lambda_.5} parent=31 // pred_fallthru
        _
      %s738 = smul.u32 16, %s18
      %p739 = scmp.lt.s32.totalorder %s738, 31
      %s740 = scalar_select %p739, %s738, 31
      %s741 = smul.addr %s740, 4
      %s742 = scalar_lea.vmem %s3, %s741
      // Predicated region
      $region41: #{_lambda_.5} parent=31 // pred_check
        %p743 = pneg %p114
      $region42: #{_lambda_.5} parent=31 // pred_check_branch
        %745 = sbr.rel (%p743) target = $region44
      $region43: #{_lambda_.5} parent=31 // pred_region
        %s746 = smul.u32 16, %s18
      $region44: #{_lambda_.5} parent=31 // pred_fallthru
        _
    $region32: #{_lambda_.5} parent=5 // pred_fallthru
      _
    %p747 = scmp.le.s32.totalorder 2, %s9
    // Predicated region
    $region45: #{_lambda_.5} parent=5 // pred_check
      %p748 = pneg %p747
    $region46: #{_lambda_.5} parent=5 // pred_check_branch
      %750 = sbr.rel (%p748) target = $region48
    $region47: #{_lambda_.5} parent=5 // pred_region
      %s751 = ssub.s32 %s9, 2
      // Predicated region
      $region49: #{_lambda_.5} parent=47 // pred_check
        %p752 = pneg %p120
      $region50: #{_lambda_.5} parent=47 // pred_check_branch
        %754 = sbr.rel (%p752) target = $region52
      $region51: #{_lambda_.5} parent=47 // pred_region
        %s755 = smul.u32 16, %s20
        %p756 = scmp.lt.s32.totalorder %s755, 31
        %s757 = scalar_select %p756, %s755, 31
        %s758 = smul.addr %s757, 4
        %s759 = scalar_lea.vmem %s3, %s758
      $region52: #{_lambda_.5} parent=47 // pred_fallthru
        _
    $region48: #{_lambda_.5} parent=5 // pred_fallthru
      _
  $region6: #{_lambda_.5} parent=0 // loop_footer
    %s13 = sadd.s32 1, %s9
  $region7: #{_lambda_.5} parent=0 // loop_footer_branch
    %8 = sbr.rel target = $region3
  $region8: #{_lambda_.5} parent=0 // loop_exit
    _

</llo_original>
